<compile_context>
chip_gen: v7x
topology: tpu7x:2x2x1
jax: 0.10.0
libtpu: 0.0.40
codegen_flags: <defaults>
</compile_context>

<pallas_src>
import functools

import jax
import jax.numpy as jnp
from jax.experimental import pallas as pl
from jax.experimental.pallas import tpu as pltpu


def mha_kernel(x_ref, wqkv_ref, wp_ref, bias_ref, o_ref, *, n_heads, head_size):
    bb, T, C = x_ref.shape
    hd = n_heads * head_size

    # Additive causal bias, computed once and shared by all batch elements / heads.
    row = jax.lax.broadcasted_iota(jnp.int32, (T, T), 0)
    col = jax.lax.broadcasted_iota(jnp.int32, (T, T), 1)
    causal_bias = jnp.where(col <= row, jnp.float32(0.0), jnp.float32(-1e30))

    wqkv = wqkv_ref[...]       # (C, 3*H*hs) bf16, pre-transposed, Q part pre-scaled
    wp = wp_ref[...]           # (H, hs, C)   bf16, pre-transposed, split per head
    bias = bias_ref[...]       # (1, C)       f32

    for b in range(bb):        # static unroll: bb is B (folded) or 1 (grid over B)
        x = x_ref[b]           # (T, C) bf16

        # One fused QKV projection on the MXU: (T, C) @ (C, 3*H*hs).
        qkv = jnp.dot(x, wqkv, preferred_element_type=jnp.float32)   # (T, 3*hd) f32

        # Per-head views stacked along a NEW LEADING dim (no lane concat, no
        # in-kernel transpose) -> (H, T, hs) for batched-over-heads einsums.
        q = jnp.stack(
            [qkv[:, h * head_size:(h + 1) * head_size] for h in range(n_heads)],
            axis=0).astype(jnp.bfloat16)
        k = jnp.stack(
            [qkv[:, hd + h * head_size: hd + (h + 1) * head_size]
             for h in range(n_heads)], axis=0).astype(jnp.bfloat16)
        v = jnp.stack(
            [qkv[:, 2 * hd + h * head_size: 2 * hd + (h + 1) * head_size]
             for h in range(n_heads)], axis=0).astype(jnp.bfloat16)

        # scores_h = (q_h / sqrt(hs)) @ k_h^T  (scale already folded into Wq);
        # leading batch dim, last-dim contraction -> MXU consumes K untransposed.
        scores = jnp.einsum('hqd,hkd->hqk', q, k,
                            preferred_element_type=jnp.float32)       # (H, T, T)
        scores = scores + causal_bias                                  # bcast over H

        # Softmax in f32; reciprocal goes to the EUP instead of a VALU divide.
        m = jnp.max(scores, axis=-1, keepdims=True)
        p = jnp.exp(scores - m)
        denom = jnp.sum(p, axis=-1, keepdims=True)
        w = p * pl.reciprocal(denom, approx=True)
        # TODO(synk): attention dropout omitted (identity in eval mode).

        ctx = jnp.einsum('hqk,hkd->hqd', w.astype(jnp.bfloat16), v,
                         preferred_element_type=jnp.float32)           # (H, T, hs)

        # Output projection without a lane-level head concat:
        #   concat_h(ctx_h) @ Wp  ==  sum_h ctx_h @ Wp[h]
        out_h = jnp.einsum('hqd,hdc->hqc', ctx.astype(jnp.bfloat16), wp,
                           preferred_element_type=jnp.float32)         # (H, T, C)
        out = sum(out_h[h] for h in range(n_heads)) + bias             # (T, C) f32

        # NOTE: with C=32 this store is a 32-lane masked store; a lane-dense
        # (1, T*C) layout would need an in-kernel sublane->lane relayout that costs
        # as much at this size.  Real model widths (C >= 128) store lane-dense as is.
        o_ref[b] = out.astype(o_ref.dtype)


def multi_head_attention(x, wq, wk, wv, wp, bp, *, n_heads, head_size,
                         batch_block=None):
    """Pallas MHA forward.

    x          : (B, T, C)
    wq, wk, wv : (H, hs, C)   per-head PyTorch Linear weights (out, in)
    wp         : (C, H*hs)    projection weight (PyTorch layout)
    bp         : (1, C)       projection bias
    """
    B, T, C = x.shape
    hd = n_heads * head_size
    if batch_block is None:
        # Single TensorCore on v5e/v6e: fold the whole batch into one grid step.
        # On v7x (2 TCs) pass batch_block=1 so grid=(B,) is split across cores.
        batch_block = B
    assert B % batch_block == 0

    # ---- wrapper-side layout plumbing (would be done once per weight set) ----
    scale = head_size ** -0.5
    # (H, hs, C) -> (C, H*hs) head-major columns; fold 1/sqrt(hs) into Q.
    wq_t = jnp.transpose(wq, (2, 0, 1)).reshape(C, hd) * scale
    wk_t = jnp.transpose(wk, (2, 0, 1)).reshape(C, hd)
    wv_t = jnp.transpose(wv, (2, 0, 1)).reshape(C, hd)
    wqkv = jnp.concatenate([wq_t, wk_t, wv_t], axis=1).astype(jnp.bfloat16)  # (C, 3*hd)
    # Projection: pre-transpose to (H*hs, C) and split per head -> (H, hs, C).
    wp_h = wp.T.reshape(n_heads, head_size, C).astype(jnp.bfloat16)
    bias = bp.astype(jnp.float32)
    x_bf = x.astype(jnp.bfloat16)                      # halves activation DMA bytes

    kernel = functools.partial(mha_kernel, n_heads=n_heads, head_size=head_size)
    return pl.pallas_call(
        kernel,
        out_shape=jax.ShapeDtypeStruct((B, T, C), x.dtype),
        grid_spec=pltpu.PrefetchScalarGridSpec(
            num_scalar_prefetch=0,
            grid=(B // batch_block,),
            in_specs=[
                pl.BlockSpec((batch_block, T, C), lambda b: (b, 0, 0)),      # x
                pl.BlockSpec((C, 3 * hd), lambda b: (0, 0)),                 # fused Wqkv
                pl.BlockSpec((n_heads, head_size, C), lambda b: (0, 0, 0)),  # Wp per head
                pl.BlockSpec((1, C), lambda b: (0, 0)),                      # bias
            ],
            out_specs=pl.BlockSpec((batch_block, T, C), lambda b: (b, 0, 0)),
        ),
        compiler_params=pltpu.CompilerParams(
            dimension_semantics=("parallel",)),
    )(x_bf, wqkv, wp_h, bias)


def reference(x, wq, wk, wv, wp, bp, *, n_heads, head_size):
    """Plain-JAX f32 reference mirroring the PyTorch forward (eval mode)."""
    B, T, C = x.shape
    row = jnp.arange(T)[:, None]
    col = jnp.arange(T)[None, :]
    causal = col <= row
    outs = []
    for h in range(n_heads):
        q = x @ wq[h].T
        k = x @ wk[h].T
        v = x @ wv[h].T
        s = (q @ jnp.swapaxes(k, -2, -1)) * head_size ** (-0.5)
        s = jnp.where(causal, s, -jnp.inf)
        w = jax.nn.softmax(s, axis=-1)
        outs.append(w @ v)
    cat = jnp.concatenate(outs, axis=-1)
    return cat @ wp.T + bp[0]


if __name__ == "__main__":
    # config: n_embed=32, n_heads=4, head_size=8, block_size(T)=8, dropout=0.0
    B, T, C = 2, 8, 32
    n_heads = 4
    head_size = C // n_heads

    key = jax.random.PRNGKey(0)
    kx, kq, kk, kv, kp, kb = jax.random.split(key, 6)

    x = jax.random.normal(kx, (B, T, C), dtype=jnp.float32)
    wq = jax.random.normal(kq, (n_heads, head_size, C), dtype=jnp.float32) * 0.02
    wk = jax.random.normal(kk, (n_heads, head_size, C), dtype=jnp.float32) * 0.02
    wv = jax.random.normal(kv, (n_heads, head_size, C), dtype=jnp.float32) * 0.02
    wp = jax.random.normal(kp, (C, n_heads * head_size), dtype=jnp.float32) * 0.02
    bp = jax.random.normal(kb, (1, C), dtype=jnp.float32) * 0.02

    out = multi_head_attention(x, wq, wk, wv, wp, bp,
                               n_heads=n_heads, head_size=head_size)
    out = jax.block_until_ready(out)

    ref = reference(x, wq, wk, wv, wp, bp, n_heads=n_heads, head_size=head_size)
    assert out.shape == (B, T, C)
    max_err = float(jnp.max(jnp.abs(out - ref)))
    assert max_err < 3e-3, f"max abs error vs f32 reference: {max_err}"

    print("KERNEL_OK")
</pallas_src>

<mosaic_0001>
module attributes {stable_mosaic.version = 11 : i64} {
  func.func @mha_kernel(%arg0: i32, %arg1: memref<2x8x32xbf16, #tpu.memory_space<vmem>>, %arg2: memref<32x96xbf16, #tpu.memory_space<vmem>>, %arg3: memref<4x8x32xbf16, #tpu.memory_space<vmem>>, %arg4: memref<1x32xf32, #tpu.memory_space<vmem>>, %arg5: memref<2x8x32xf32, #tpu.memory_space<vmem>>) attributes {dimension_semantics = [#tpu.dimension_semantics<parallel>], iteration_bounds = array<i64: 1>, scalar_prefetch = 0 : i64, scratch_operands = 0 : i64, tpu.core_type = #tpu.core_type<tc>, window_params = [{transform_indices = @transform_0, window_bounds = array<i64: 2, 8, 32>}, {pipeline_mode = #tpu.pipeline_mode<synchronous>, transform_indices = @transform_1, window_bounds = array<i64: 32, 96>}, {pipeline_mode = #tpu.pipeline_mode<synchronous>, transform_indices = @transform_2, window_bounds = array<i64: 4, 8, 32>}, {pipeline_mode = #tpu.pipeline_mode<synchronous>, transform_indices = @transform_3, window_bounds = array<i64: 1, 32>}, {transform_indices = @transform_4, window_bounds = array<i64: 2, 8, 32>}]} {
    %0 = tpu.iota {dimensions = array<i32: 0>} : vector<8x8xi32>
    %1 = tpu.iota {dimensions = array<i32: 1>} : vector<8x8xi32>
    %2 = arith.cmpi sle, %1, %0 : vector<8x8xi32>
    %cst = arith.constant 0.000000e+00 : f32
    %cst_0 = arith.constant -1.000000e+30 : f32
    %3 = vector.broadcast %cst : f32 to vector<8x8xf32>
    %4 = vector.broadcast %cst_0 : f32 to vector<8x8xf32>
    %5 = arith.select %2, %3, %4 : vector<8x8xi1>, vector<8x8xf32>
    %c0 = arith.constant 0 : index
    %c0_1 = arith.constant 0 : index
    %6 = vector.load %arg2[%c0, %c0_1] : memref<32x96xbf16, #tpu.memory_space<vmem>>, vector<32x96xbf16>
    %c0_2 = arith.constant 0 : index
    %c0_3 = arith.constant 0 : index
    %c0_4 = arith.constant 0 : index
    %7 = vector.load %arg3[%c0_2, %c0_3, %c0_4] : memref<4x8x32xbf16, #tpu.memory_space<vmem>>, vector<4x8x32xbf16>
    %c0_5 = arith.constant 0 : index
    %c0_6 = arith.constant 0 : index
    %8 = vector.load %arg4[%c0_5, %c0_6] : memref<1x32xf32, #tpu.memory_space<vmem>>, vector<1x32xf32>
    %c0_7 = arith.constant 0 : index
    %c0_8 = arith.constant 0 : index
    %c0_9 = arith.constant 0 : index
    %9 = vector.load %arg1[%c0_7, %c0_8, %c0_9] : memref<2x8x32xbf16, #tpu.memory_space<vmem>>, vector<1x8x32xbf16>
    %10 = vector.shape_cast %9 : vector<1x8x32xbf16> to vector<8x32xbf16>
    %cst_10 = arith.constant dense<0.000000e+00> : vector<8x96xf32>
    %11 = tpu.matmul %10, %6, %cst_10 {dimension_numbers = #tpu.dot_dimension_numbers<[1], [0], [0], [1], [0, 0, 1, 1], [], []>} : vector<8x32xbf16>, vector<32x96xbf16>, vector<8x96xf32> -> vector<8x96xf32>
    %12 = vector.extract_strided_slice %11 {offsets = [0, 0], sizes = [8, 8], strides = [1, 1]} : vector<8x96xf32> to vector<8x8xf32>
    %13 = vector.extract_strided_slice %11 {offsets = [0, 8], sizes = [8, 8], strides = [1, 1]} : vector<8x96xf32> to vector<8x8xf32>
    %14 = vector.extract_strided_slice %11 {offsets = [0, 16], sizes = [8, 8], strides = [1, 1]} : vector<8x96xf32> to vector<8x8xf32>
    %15 = vector.extract_strided_slice %11 {offsets = [0, 24], sizes = [8, 8], strides = [1, 1]} : vector<8x96xf32> to vector<8x8xf32>
    %16 = vector.shape_cast %12 : vector<8x8xf32> to vector<1x8x8xf32>
    %17 = vector.shape_cast %13 : vector<8x8xf32> to vector<1x8x8xf32>
    %18 = vector.shape_cast %14 : vector<8x8xf32> to vector<1x8x8xf32>
    %19 = vector.shape_cast %15 : vector<8x8xf32> to vector<1x8x8xf32>
    %20 = tpu.concatenate %16, %17, %18, %19 in 0 : vector<1x8x8xf32>, vector<1x8x8xf32>, vector<1x8x8xf32>, vector<1x8x8xf32> -> vector<4x8x8xf32>
    %21 = arith.truncf %20 : vector<4x8x8xf32> to vector<4x8x8xbf16>
    %22 = vector.extract_strided_slice %11 {offsets = [0, 32], sizes = [8, 8], strides = [1, 1]} : vector<8x96xf32> to vector<8x8xf32>
    %23 = vector.extract_strided_slice %11 {offsets = [0, 40], sizes = [8, 8], strides = [1, 1]} : vector<8x96xf32> to vector<8x8xf32>
    %24 = vector.extract_strided_slice %11 {offsets = [0, 48], sizes = [8, 8], strides = [1, 1]} : vector<8x96xf32> to vector<8x8xf32>
    %25 = vector.extract_strided_slice %11 {offsets = [0, 56], sizes = [8, 8], strides = [1, 1]} : vector<8x96xf32> to vector<8x8xf32>
    %26 = vector.shape_cast %22 : vector<8x8xf32> to vector<1x8x8xf32>
    %27 = vector.shape_cast %23 : vector<8x8xf32> to vector<1x8x8xf32>
    %28 = vector.shape_cast %24 : vector<8x8xf32> to vector<1x8x8xf32>
    %29 = vector.shape_cast %25 : vector<8x8xf32> to vector<1x8x8xf32>
    %30 = tpu.concatenate %26, %27, %28, %29 in 0 : vector<1x8x8xf32>, vector<1x8x8xf32>, vector<1x8x8xf32>, vector<1x8x8xf32> -> vector<4x8x8xf32>
    %31 = arith.truncf %30 : vector<4x8x8xf32> to vector<4x8x8xbf16>
    %32 = vector.extract_strided_slice %11 {offsets = [0, 64], sizes = [8, 8], strides = [1, 1]} : vector<8x96xf32> to vector<8x8xf32>
    %33 = vector.extract_strided_slice %11 {offsets = [0, 72], sizes = [8, 8], strides = [1, 1]} : vector<8x96xf32> to vector<8x8xf32>
    %34 = vector.extract_strided_slice %11 {offsets = [0, 80], sizes = [8, 8], strides = [1, 1]} : vector<8x96xf32> to vector<8x8xf32>
    %35 = vector.extract_strided_slice %11 {offsets = [0, 88], sizes = [8, 8], strides = [1, 1]} : vector<8x96xf32> to vector<8x8xf32>
    %36 = vector.shape_cast %32 : vector<8x8xf32> to vector<1x8x8xf32>
    %37 = vector.shape_cast %33 : vector<8x8xf32> to vector<1x8x8xf32>
    %38 = vector.shape_cast %34 : vector<8x8xf32> to vector<1x8x8xf32>
    %39 = vector.shape_cast %35 : vector<8x8xf32> to vector<1x8x8xf32>
    %40 = tpu.concatenate %36, %37, %38, %39 in 0 : vector<1x8x8xf32>, vector<1x8x8xf32>, vector<1x8x8xf32>, vector<1x8x8xf32> -> vector<4x8x8xf32>
    %41 = arith.truncf %40 : vector<4x8x8xf32> to vector<4x8x8xbf16>
    "tpu.trace_start"() <{level = 10 : i32, message = "hqd,hkd->hqk"}> : () -> ()
    %cst_11 = arith.constant dense<0.000000e+00> : vector<4x8x8xf32>
    %42 = tpu.matmul %21, %31, %cst_11 {dimension_numbers = #tpu.dot_dimension_numbers<[2], [2], [1], [1], [0, 0, 0, 1, 1, 1], [0], [0]>} : vector<4x8x8xbf16>, vector<4x8x8xbf16>, vector<4x8x8xf32> -> vector<4x8x8xf32>
    "tpu.trace_stop"() : () -> ()
    %43 = vector.shape_cast %5 : vector<8x8xf32> to vector<1x8x8xf32>
    %44 = vector.broadcast %43 : vector<1x8x8xf32> to vector<4x8x8xf32>
    %45 = arith.addf %42, %44 : vector<4x8x8xf32>
    %cst_12 = arith.constant dense<0xFF800000> : vector<4x8xf32>
    %46 = vector.multi_reduction <maximumf>, %45, %cst_12 [2] : vector<4x8x8xf32> to vector<4x8xf32>
    %47 = vector.shape_cast %46 : vector<4x8xf32> to vector<4x8x1xf32>
    %48 = vector.broadcast %47 : vector<4x8x1xf32> to vector<4x8x8xf32>
    %49 = arith.subf %45, %48 : vector<4x8x8xf32>
    %50 = math.exp %49 : vector<4x8x8xf32>
    %cst_13 = arith.constant dense<0.000000e+00> : vector<4x8xf32>
    %51 = vector.multi_reduction <add>, %50, %cst_13 [2] : vector<4x8x8xf32> to vector<4x8xf32>
    %52 = vector.shape_cast %51 : vector<4x8xf32> to vector<4x8x1xf32>
    %53 = tpu.reciprocal %52 {approx = true} : vector<4x8x1xf32> -> vector<4x8x1xf32>
    %54 = vector.broadcast %53 : vector<4x8x1xf32> to vector<4x8x8xf32>
    %55 = arith.mulf %50, %54 : vector<4x8x8xf32>
    %56 = arith.truncf %55 : vector<4x8x8xf32> to vector<4x8x8xbf16>
    "tpu.trace_start"() <{level = 10 : i32, message = "hqk,hkd->hqd"}> : () -> ()
    %cst_14 = arith.constant dense<0.000000e+00> : vector<4x8x8xf32>
    %57 = tpu.matmul %56, %41, %cst_14 {dimension_numbers = #tpu.dot_dimension_numbers<[2], [1], [1], [2], [0, 0, 0, 1, 1, 2], [0], [0]>} : vector<4x8x8xbf16>, vector<4x8x8xbf16>, vector<4x8x8xf32> -> vector<4x8x8xf32>
    "tpu.trace_stop"() : () -> ()
    %58 = arith.truncf %57 : vector<4x8x8xf32> to vector<4x8x8xbf16>
    "tpu.trace_start"() <{level = 10 : i32, message = "hqd,hdc->hqc"}> : () -> ()
    %cst_15 = arith.constant dense<0.000000e+00> : vector<4x8x32xf32>
    %59 = tpu.matmul %58, %7, %cst_15 {dimension_numbers = #tpu.dot_dimension_numbers<[2], [1], [1], [2], [0, 0, 0, 1, 1, 2], [0], [0]>} : vector<4x8x8xbf16>, vector<4x8x32xbf16>, vector<4x8x32xf32> -> vector<4x8x32xf32>
    "tpu.trace_stop"() : () -> ()
    %60 = vector.extract_strided_slice %59 {offsets = [0, 0, 0], sizes = [1, 8, 32], strides = [1, 1, 1]} : vector<4x8x32xf32> to vector<1x8x32xf32>
    %61 = vector.shape_cast %60 : vector<1x8x32xf32> to vector<8x32xf32>
    %cst_16 = arith.constant 0.000000e+00 : f32
    %62 = vector.broadcast %cst_16 : f32 to vector<8x32xf32>
    %63 = arith.addf %62, %61 : vector<8x32xf32>
    %64 = vector.extract_strided_slice %59 {offsets = [1, 0, 0], sizes = [1, 8, 32], strides = [1, 1, 1]} : vector<4x8x32xf32> to vector<1x8x32xf32>
    %65 = vector.shape_cast %64 : vector<1x8x32xf32> to vector<8x32xf32>
    %66 = arith.addf %63, %65 : vector<8x32xf32>
    %67 = vector.extract_strided_slice %59 {offsets = [2, 0, 0], sizes = [1, 8, 32], strides = [1, 1, 1]} : vector<4x8x32xf32> to vector<1x8x32xf32>
    %68 = vector.shape_cast %67 : vector<1x8x32xf32> to vector<8x32xf32>
    %69 = arith.addf %66, %68 : vector<8x32xf32>
    %70 = vector.extract_strided_slice %59 {offsets = [3, 0, 0], sizes = [1, 8, 32], strides = [1, 1, 1]} : vector<4x8x32xf32> to vector<1x8x32xf32>
    %71 = vector.shape_cast %70 : vector<1x8x32xf32> to vector<8x32xf32>
    %72 = arith.addf %69, %71 : vector<8x32xf32>
    %73 = vector.broadcast %8 : vector<1x32xf32> to vector<8x32xf32>
    %74 = arith.addf %72, %73 : vector<8x32xf32>
    %c0_17 = arith.constant 0 : index
    %c0_18 = arith.constant 0 : index
    %c0_19 = arith.constant 0 : index
    %75 = vector.load %arg5[%c0_17, %c0_18, %c0_19] : memref<2x8x32xf32, #tpu.memory_space<vmem>>, vector<1x8x32xf32>
    %76 = vector.shape_cast %75 : vector<1x8x32xf32> to vector<8x32xf32>
    %77 = vector.shape_cast %74 : vector<8x32xf32> to vector<1x8x32xf32>
    tpu.vector_store %arg5[%c0_17, %c0_18, %c0_19], %77 {strides = array<i32>} : memref<2x8x32xf32, #tpu.memory_space<vmem>>, vector<1x8x32xf32>,
    %c1 = arith.constant 1 : index
    %c0_20 = arith.constant 0 : index
    %c0_21 = arith.constant 0 : index
    %78 = vector.load %arg1[%c1, %c0_20, %c0_21] : memref<2x8x32xbf16, #tpu.memory_space<vmem>>, vector<1x8x32xbf16>
    %79 = vector.shape_cast %78 : vector<1x8x32xbf16> to vector<8x32xbf16>
    %cst_22 = arith.constant dense<0.000000e+00> : vector<8x96xf32>
    %80 = tpu.matmul %79, %6, %cst_22 {dimension_numbers = #tpu.dot_dimension_numbers<[1], [0], [0], [1], [0, 0, 1, 1], [], []>} : vector<8x32xbf16>, vector<32x96xbf16>, vector<8x96xf32> -> vector<8x96xf32>
    %81 = vector.extract_strided_slice %80 {offsets = [0, 0], sizes = [8, 8], strides = [1, 1]} : vector<8x96xf32> to vector<8x8xf32>
    %82 = vector.extract_strided_slice %80 {offsets = [0, 8], sizes = [8, 8], strides = [1, 1]} : vector<8x96xf32> to vector<8x8xf32>
    %83 = vector.extract_strided_slice %80 {offsets = [0, 16], sizes = [8, 8], strides = [1, 1]} : vector<8x96xf32> to vector<8x8xf32>
    %84 = vector.extract_strided_slice %80 {offsets = [0, 24], sizes = [8, 8], strides = [1, 1]} : vector<8x96xf32> to vector<8x8xf32>
    %85 = vector.shape_cast %81 : vector<8x8xf32> to vector<1x8x8xf32>
    %86 = vector.shape_cast %82 : vector<8x8xf32> to vector<1x8x8xf32>
    %87 = vector.shape_cast %83 : vector<8x8xf32> to vector<1x8x8xf32>
    %88 = vector.shape_cast %84 : vector<8x8xf32> to vector<1x8x8xf32>
    %89 = tpu.concatenate %85, %86, %87, %88 in 0 : vector<1x8x8xf32>, vector<1x8x8xf32>, vector<1x8x8xf32>, vector<1x8x8xf32> -> vector<4x8x8xf32>
    %90 = arith.truncf %89 : vector<4x8x8xf32> to vector<4x8x8xbf16>
    %91 = vector.extract_strided_slice %80 {offsets = [0, 32], sizes = [8, 8], strides = [1, 1]} : vector<8x96xf32> to vector<8x8xf32>
    %92 = vector.extract_strided_slice %80 {offsets = [0, 40], sizes = [8, 8], strides = [1, 1]} : vector<8x96xf32> to vector<8x8xf32>
    %93 = vector.extract_strided_slice %80 {offsets = [0, 48], sizes = [8, 8], strides = [1, 1]} : vector<8x96xf32> to vector<8x8xf32>
    %94 = vector.extract_strided_slice %80 {offsets = [0, 56], sizes = [8, 8], strides = [1, 1]} : vector<8x96xf32> to vector<8x8xf32>
    %95 = vector.shape_cast %91 : vector<8x8xf32> to vector<1x8x8xf32>
    %96 = vector.shape_cast %92 : vector<8x8xf32> to vector<1x8x8xf32>
    %97 = vector.shape_cast %93 : vector<8x8xf32> to vector<1x8x8xf32>
    %98 = vector.shape_cast %94 : vector<8x8xf32> to vector<1x8x8xf32>
    %99 = tpu.concatenate %95, %96, %97, %98 in 0 : vector<1x8x8xf32>, vector<1x8x8xf32>, vector<1x8x8xf32>, vector<1x8x8xf32> -> vector<4x8x8xf32>
    %100 = arith.truncf %99 : vector<4x8x8xf32> to vector<4x8x8xbf16>
    %101 = vector.extract_strided_slice %80 {offsets = [0, 64], sizes = [8, 8], strides = [1, 1]} : vector<8x96xf32> to vector<8x8xf32>
    %102 = vector.extract_strided_slice %80 {offsets = [0, 72], sizes = [8, 8], strides = [1, 1]} : vector<8x96xf32> to vector<8x8xf32>
    %103 = vector.extract_strided_slice %80 {offsets = [0, 80], sizes = [8, 8], strides = [1, 1]} : vector<8x96xf32> to vector<8x8xf32>
    %104 = vector.extract_strided_slice %80 {offsets = [0, 88], sizes = [8, 8], strides = [1, 1]} : vector<8x96xf32> to vector<8x8xf32>
    %105 = vector.shape_cast %101 : vector<8x8xf32> to vector<1x8x8xf32>
    %106 = vector.shape_cast %102 : vector<8x8xf32> to vector<1x8x8xf32>
    %107 = vector.shape_cast %103 : vector<8x8xf32> to vector<1x8x8xf32>
    %108 = vector.shape_cast %104 : vector<8x8xf32> to vector<1x8x8xf32>
    %109 = tpu.concatenate %105, %106, %107, %108 in 0 : vector<1x8x8xf32>, vector<1x8x8xf32>, vector<1x8x8xf32>, vector<1x8x8xf32> -> vector<4x8x8xf32>
    %110 = arith.truncf %109 : vector<4x8x8xf32> to vector<4x8x8xbf16>
    "tpu.trace_start"() <{level = 10 : i32, message = "hqd,hkd->hqk"}> : () -> ()
    %cst_23 = arith.constant dense<0.000000e+00> : vector<4x8x8xf32>
    %111 = tpu.matmul %90, %100, %cst_23 {dimension_numbers = #tpu.dot_dimension_numbers<[2], [2], [1], [1], [0, 0, 0, 1, 1, 1], [0], [0]>} : vector<4x8x8xbf16>, vector<4x8x8xbf16>, vector<4x8x8xf32> -> vector<4x8x8xf32>
    "tpu.trace_stop"() : () -> ()
    %112 = vector.shape_cast %5 : vector<8x8xf32> to vector<1x8x8xf32>
    %113 = vector.broadcast %112 : vector<1x8x8xf32> to vector<4x8x8xf32>
    %114 = arith.addf %111, %113 : vector<4x8x8xf32>
    %cst_24 = arith.constant dense<0xFF800000> : vector<4x8xf32>
    %115 = vector.multi_reduction <maximumf>, %114, %cst_24 [2] : vector<4x8x8xf32> to vector<4x8xf32>
    %116 = vector.shape_cast %115 : vector<4x8xf32> to vector<4x8x1xf32>
    %117 = vector.broadcast %116 : vector<4x8x1xf32> to vector<4x8x8xf32>
    %118 = arith.subf %114, %117 : vector<4x8x8xf32>
    %119 = math.exp %118 : vector<4x8x8xf32>
    %cst_25 = arith.constant dense<0.000000e+00> : vector<4x8xf32>
    %120 = vector.multi_reduction <add>, %119, %cst_25 [2] : vector<4x8x8xf32> to vector<4x8xf32>
    %121 = vector.shape_cast %120 : vector<4x8xf32> to vector<4x8x1xf32>
    %122 = tpu.reciprocal %121 {approx = true} : vector<4x8x1xf32> -> vector<4x8x1xf32>
    %123 = vector.broadcast %122 : vector<4x8x1xf32> to vector<4x8x8xf32>
    %124 = arith.mulf %119, %123 : vector<4x8x8xf32>
    %125 = arith.truncf %124 : vector<4x8x8xf32> to vector<4x8x8xbf16>
    "tpu.trace_start"() <{level = 10 : i32, message = "hqk,hkd->hqd"}> : () -> ()
    %cst_26 = arith.constant dense<0.000000e+00> : vector<4x8x8xf32>
    %126 = tpu.matmul %125, %110, %cst_26 {dimension_numbers = #tpu.dot_dimension_numbers<[2], [1], [1], [2], [0, 0, 0, 1, 1, 2], [0], [0]>} : vector<4x8x8xbf16>, vector<4x8x8xbf16>, vector<4x8x8xf32> -> vector<4x8x8xf32>
    "tpu.trace_stop"() : () -> ()
    %127 = arith.truncf %126 : vector<4x8x8xf32> to vector<4x8x8xbf16>
    "tpu.trace_start"() <{level = 10 : i32, message = "hqd,hdc->hqc"}> : () -> ()
    %cst_27 = arith.constant dense<0.000000e+00> : vector<4x8x32xf32>
    %128 = tpu.matmul %127, %7, %cst_27 {dimension_numbers = #tpu.dot_dimension_numbers<[2], [1], [1], [2], [0, 0, 0, 1, 1, 2], [0], [0]>} : vector<4x8x8xbf16>, vector<4x8x32xbf16>, vector<4x8x32xf32> -> vector<4x8x32xf32>
    "tpu.trace_stop"() : () -> ()
    %129 = vector.extract_strided_slice %128 {offsets = [0, 0, 0], sizes = [1, 8, 32], strides = [1, 1, 1]} : vector<4x8x32xf32> to vector<1x8x32xf32>
    %130 = vector.shape_cast %129 : vector<1x8x32xf32> to vector<8x32xf32>
    %cst_28 = arith.constant 0.000000e+00 : f32
    %131 = vector.broadcast %cst_28 : f32 to vector<8x32xf32>
    %132 = arith.addf %131, %130 : vector<8x32xf32>
    %133 = vector.extract_strided_slice %128 {offsets = [1, 0, 0], sizes = [1, 8, 32], strides = [1, 1, 1]} : vector<4x8x32xf32> to vector<1x8x32xf32>
    %134 = vector.shape_cast %133 : vector<1x8x32xf32> to vector<8x32xf32>
    %135 = arith.addf %132, %134 : vector<8x32xf32>
    %136 = vector.extract_strided_slice %128 {offsets = [2, 0, 0], sizes = [1, 8, 32], strides = [1, 1, 1]} : vector<4x8x32xf32> to vector<1x8x32xf32>
    %137 = vector.shape_cast %136 : vector<1x8x32xf32> to vector<8x32xf32>
    %138 = arith.addf %135, %137 : vector<8x32xf32>
    %139 = vector.extract_strided_slice %128 {offsets = [3, 0, 0], sizes = [1, 8, 32], strides = [1, 1, 1]} : vector<4x8x32xf32> to vector<1x8x32xf32>
    %140 = vector.shape_cast %139 : vector<1x8x32xf32> to vector<8x32xf32>
    %141 = arith.addf %138, %140 : vector<8x32xf32>
    %142 = vector.broadcast %8 : vector<1x32xf32> to vector<8x32xf32>
    %143 = arith.addf %141, %142 : vector<8x32xf32>
    %c1_29 = arith.constant 1 : index
    %c0_30 = arith.constant 0 : index
    %c0_31 = arith.constant 0 : index
    %144 = vector.load %arg5[%c1_29, %c0_30, %c0_31] : memref<2x8x32xf32, #tpu.memory_space<vmem>>, vector<1x8x32xf32>
    %145 = vector.shape_cast %144 : vector<1x8x32xf32> to vector<8x32xf32>
    %146 = vector.shape_cast %143 : vector<8x32xf32> to vector<1x8x32xf32>
    tpu.vector_store %arg5[%c1_29, %c0_30, %c0_31], %146 {strides = array<i32>} : memref<2x8x32xf32, #tpu.memory_space<vmem>>, vector<1x8x32xf32>,
    return
  }
  func.func @transform_0(%arg0: i32) -> (i32, i32, i32) {
    %c0_i32 = arith.constant 0 : i32
    %c0_i32_0 = arith.constant 0 : i32
    %c0_i32_1 = arith.constant 0 : i32
    return %arg0, %c0_i32, %c0_i32_0 : i32, i32, i32
  }
  func.func @transform_1(%arg0: i32) -> (i32, i32) {
    %c0_i32 = arith.constant 0 : i32
    %c0_i32_0 = arith.constant 0 : i32
    %c0_i32_1 = arith.constant 0 : i32
    return %c0_i32, %c0_i32_0 : i32, i32
  }
  func.func @transform_2(%arg0: i32) -> (i32, i32, i32) {
    %c0_i32 = arith.constant 0 : i32
    %c0_i32_0 = arith.constant 0 : i32
    %c0_i32_1 = arith.constant 0 : i32
    %c0_i32_2 = arith.constant 0 : i32
    return %c0_i32, %c0_i32_0, %c0_i32_1 : i32, i32, i32
  }
  func.func @transform_3(%arg0: i32) -> (i32, i32) {
    %c0_i32 = arith.constant 0 : i32
    %c0_i32_0 = arith.constant 0 : i32
    %c0_i32_1 = arith.constant 0 : i32
    return %c0_i32, %c0_i32_0 : i32, i32
  }
  func.func @transform_4(%arg0: i32) -> (i32, i32, i32) {
    %c0_i32 = arith.constant 0 : i32
    %c0_i32_0 = arith.constant 0 : i32
    %c0_i32_1 = arith.constant 0 : i32
    return %arg0, %c0_i32, %c0_i32_0 : i32, i32, i32
  }
}

</mosaic_0001>

<llo_original>
// kernel: tpu_custom_call.1
$region0: #{tpu_custom_call.1}
  #allocation0 [shape = 'u32[]', space=smem, size = 0x4, offset = 0x4, fixed_abs, tag = 'smem constant byte address 0x4 - core index']
  #allocation1 [shape = 'u32[144,128]{1,0:T(1,128)}', space=vmem, size = 0x12000, scoped, tag = 'internal scratch']
  %s0 = inlined_call_operand.hbm [shape: bf16[2,8,32], index: 0, kind: input, shape index: {}]
  %s1 = inlined_call_operand.hbm [shape: bf16[32,96], index: 1, kind: input, shape index: {}]
  %s2 = inlined_call_operand.hbm [shape: bf16[4,8,32], index: 2, kind: input, shape index: {}]
  %s3 = inlined_call_operand.vmem [shape: f32[1,32], index: 3, kind: input, shape index: {}]
  %s4 = inlined_call_operand.hbm [shape: f32[2,8,32], index: 4, kind: output, shape index: {}]
  %s5 = sld [smem:[#allocation0]]
  $region38: #{tpu_custom_call.1} parent=0
    _
  %s7 = ssub.s32 1, %s5
  %s8 = scalar_select 0, %s7, %s5
  $region1: #{tpu_custom_call.1} parent=0
    #allocation2 [shape = 'u8[4096]{0}', space=vmem, size = 0x1000, scoped, tag = 'input window, operand 0, single buffered']
    #allocation3 [shape = 's32[1]{0}', space=sflag, size = 0x4, scoped, tag = 'scoped memory for tpu_custom_call.1']
    #allocation4 [shape = 's32[1]{0}', space=sflag, size = 0x4, scoped, tag = 'scoped memory for tpu_custom_call.1']
    #allocation5 [shape = 'u8[8192]{0}', space=vmem, size = 0x2000, scoped, tag = 'input window, operand 1, single buffered']
    #allocation6 [shape = 's32[1]{0}', space=sflag, size = 0x4, scoped, tag = 'scoped memory for tpu_custom_call.1']
    #allocation7 [shape = 'u8[8192]{0}', space=vmem, size = 0x2000, scoped, tag = 'input window, operand 2, single buffered']
    #allocation8 [shape = 'u8[8192]{0}', space=vmem, size = 0x2000, scoped, tag = 'output window, operand 0, single buffered']
    %9 = vsyncpa [#allocation3], 0
    %10 = vsyncpa [#allocation6], 0
    %11 = vsyncpa [#allocation4], 0
    // Predicated region
    $region2: #{tpu_custom_call.1} parent=1 // pred_check
      _
    $region3: #{tpu_custom_call.1} parent=1 // pred_check_branch
      %13 = sbr.rel (0) target = $region5
    $region4: #{tpu_custom_call.1} parent=1 // pred_region
      %s15 = ssub.s32 128, 128
      %16 = vsyncadd [#allocation3], %s15
      %s17 = sshll.u32 [#allocation2], 4
      %s18 = int_to_ptr.vmem [resolvable:$true] %s17
      %23 = dma.hbm_to_vmem [thread:$0]  %s0, 128, %s18, [#allocation3], 64, 64, 4
    $region5: #{tpu_custom_call.1} parent=1 // pred_fallthru
      _
    // Predicated region
    $region6: #{tpu_custom_call.1} parent=1 // pred_check
      _
    $region7: #{tpu_custom_call.1} parent=1 // pred_check_branch
      %25 = sbr.rel (0) target = $region9
    $region8: #{tpu_custom_call.1} parent=1 // pred_region
      %s27 = ssub.s32 256, 256
      %28 = vsyncadd [#allocation6], %s27
      %s29 = sshll.u32 [#allocation5], 4
      %s30 = int_to_ptr.vmem [resolvable:$true] %s29
      %35 = dma.hbm_to_vmem [thread:$0]  %s1, 256, %s30, [#allocation6], 64, 64, 4
    $region9: #{tpu_custom_call.1} parent=1 // pred_fallthru
      _
    // Predicated region
    $region10: #{tpu_custom_call.1} parent=1 // pred_check
      _
    $region11: #{tpu_custom_call.1} parent=1 // pred_check_branch
      %37 = sbr.rel (0) target = $region13
    $region12: #{tpu_custom_call.1} parent=1 // pred_region
      %s39 = ssub.s32 256, 256
      %40 = vsyncadd [#allocation6], %s39
      %s41 = sshll.u32 [#allocation7], 4
      %s42 = int_to_ptr.vmem [resolvable:$true] %s41
      %47 = dma.hbm_to_vmem [thread:$0]  %s2, 256, %s42, [#allocation6], 64, 64, 4
    $region13: #{tpu_custom_call.1} parent=1 // pred_fallthru
      _
    // Predicated region
    $region14: #{tpu_custom_call.1} parent=1 // pred_check
      _
    $region15: #{tpu_custom_call.1} parent=1 // pred_check_branch
      %49 = sbr.rel (0) target = $region17
    $region16: #{tpu_custom_call.1} parent=1 // pred_region
      _
    $region17: #{tpu_custom_call.1} parent=1 // pred_fallthru
      _
    // Predicated region
    $region18: #{tpu_custom_call.1} parent=1 // pred_check
      _
    $region19: #{tpu_custom_call.1} parent=1 // pred_check_branch
      %51 = sbr.rel (0) target = $region21
    $region20: #{tpu_custom_call.1} parent=1 // pred_region
      %52 = dma.done [#allocation3], 128
    $region21: #{tpu_custom_call.1} parent=1 // pred_fallthru
      _
    // Predicated region
    $region22: #{tpu_custom_call.1} parent=1 // pred_check
      _
    $region23: #{tpu_custom_call.1} parent=1 // pred_check_branch
      %54 = sbr.rel (0) target = $region25
    $region24: #{tpu_custom_call.1} parent=1 // pred_region
      %55 = dma.done [#allocation6], 256
    $region25: #{tpu_custom_call.1} parent=1 // pred_fallthru
      _
    // Predicated region
    $region26: #{tpu_custom_call.1} parent=1 // pred_check
      _
    $region27: #{tpu_custom_call.1} parent=1 // pred_check_branch
      %57 = sbr.rel (0) target = $region29
    $region28: #{tpu_custom_call.1} parent=1 // pred_region
      %58 = dma.done [#allocation6], 256
    $region29: #{tpu_custom_call.1} parent=1 // pred_fallthru
      _
    %v60 = vlaneseq
    %v61 = vshrl.u32 %v60, 7
    %v62 = vlaneseq
    %v63 = vand.u32 %v62, 127
    %vm64 = vcmp.le.s32.totalorder %v63, %v61
    %v65 = vsel %vm64, 0.0, -1e+30
    %v66 = vld [vmem:[#allocation5] sm:$0xf]
    %v67 = vld [vmem:[#allocation5 + $0x4] sm:$0xf]
    %v68 = vld [vmem:[#allocation5 + $0x8] sm:$0xf]
    %v69 = vld [vmem:[#allocation5 + $0xc] sm:$0xf]
    %v70 = vld [vmem:[#allocation7] sm:$0xf]
    %v71 = vld [vmem:[#allocation7 + $0x4] sm:$0xf]
    %v72 = vld [vmem:[#allocation7 + $0x8] sm:$0xf]
    %v73 = vld [vmem:[#allocation7 + $0xc] sm:$0xf]
    %v74 = vld [vmem:[%s3] sm:$0x1]
    %v75 = vld [vmem:[#allocation2] sm:$0xf]
    %v80 = vunpack.c.l.b16 %v66
    %v81 = vunpack.c.l.b16 %v67
    %v82 = vunpack.c.l.b16 %v68
    %v83 = vunpack.c.l.b16 %v69
    %v84 = vpack.c.b16 %v81, %v80
    %v85 = vpack.c.b16 %v83, %v82
    %vm88 = vcmask 261120
    %v90 = vsel %vm88, %v75, 0
    %92 = vmatprep.subr.bf16.mxu0 0
    %93 = vmatpush1.bf16.msra.mxu0 %v84
    %94 = vmatprep.subr.bf16.mxu0 0
    %95 = vmatpush1.bf16.msra.mxu0 %v85
    %96 = vmatprep.subr.bf16.mxu0 0
    %97 = vmatpush1.bf16.msra.mxu0 0
    %98 = vmatprep.subr.bf16.mxu0 0
    %99 = vmatpush1.bf16.msra.mxu0 0
    %100 = vmatprep.subr.bf16.mxu0 0
    %101 = vmatpush1.bf16.msra.mxu0 0
    %102 = vmatprep.subr.bf16.mxu0 0
    %103 = vmatpush1.bf16.msra.mxu0 0
    %104 = vmatprep.subr.bf16.mxu0 0
    %105 = vmatpush1.bf16.msra.mxu0 0
    %106 = vmatprep.subr.bf16.mxu0 0
    %107 = vmatpush1.bf16.msra.mxu0 0
    %108 = vmatprep.subr.bf16.mxu0 0
    %109 = vmatpush1.bf16.msra.mxu0 0
    %110 = vmatprep.subr.bf16.mxu0 0
    %111 = vmatpush1.bf16.msra.mxu0 0
    %112 = vmatprep.subr.bf16.mxu0 0
    %113 = vmatpush1.bf16.msra.mxu0 0
    %114 = vmatprep.subr.bf16.mxu0 0
    %115 = vmatpush1.bf16.msra.mxu0 0
    %116 = vmatprep.subr.bf16.mxu0 0
    %117 = vmatpush1.bf16.msra.mxu0 0
    %118 = vmatprep.subr.bf16.mxu0 0
    %119 = vmatpush1.bf16.msra.mxu0 0
    %120 = vmatprep.subr.bf16.mxu0 0
    %121 = vmatpush1.bf16.msra.mxu0 0
    %122 = vmatprep.subr.bf16.mxu0 0
    %123 = vmatpush1.bf16.msra.mxu0 0
    %124 = vmatprep.mubr.bf16.mxu0 0
    %125 = vmatmul.mubr.bf16.gmra.mrb[0].mxu0 %v90
    %v126 = vpop.f32.mrb[0].mxu0
    %v127 = vadd.f32 0.0, %v126
    %v128 = vpop.f32.mrb[0].mxu0
    %v129 = vpop.f32.mrb[0].mxu0
    %v130 = vpop.f32.mrb[0].mxu0
    %131 = vdwg.mxu0
    %133 = vrot.lane.b32.xlu0 %v127, 120
    %v134 = vpop.permute.xlu0 %133
    %136 = vrot.lane.b32.xlu0 %v127, 112
    %v137 = vpop.permute.xlu0 %136
    %139 = vrot.lane.b32.xlu0 %v127, 104
    %v140 = vpop.permute.xlu0 %139
    %v142 = vpack.c.bf16 %v127, %v127
    %v143 = vpack.c.bf16 %v134, %v134
    %v144 = vpack.c.bf16 %v137, %v137
    %v145 = vpack.c.bf16 %v140, %v140
    %147 = vrot.lane.b32.xlu0 %v142, 96
    %v148 = vpop.permute.xlu0 %147
    %vm149 = vcmask 64512
    %v151 = vsel %vm149, %v142, 0
    %v154 = vsel %vm149, %v148, 0
    %156 = vmatprep.subr.bf16.mxu0 0
    %157 = vmatpush1.bf16.xpose.msra.mxu0 %v154
    %158 = vmatprep.subr.bf16.mxu0 0
    %159 = vmatpush1.bf16.xpose.msra.mxu0 0
    %160 = vmatprep.subr.bf16.mxu0 0
    %161 = vmatpush1.bf16.xpose.msra.mxu0 0
    %162 = vmatprep.subr.bf16.mxu0 0
    %163 = vmatpush1.bf16.xpose.msra.mxu0 0
    %164 = vmatprep.subr.bf16.mxu0 0
    %165 = vmatpush1.bf16.xpose.msra.mxu0 0
    %166 = vmatprep.subr.bf16.mxu0 0
    %167 = vmatpush1.bf16.xpose.msra.mxu0 0
    %168 = vmatprep.subr.bf16.mxu0 0
    %169 = vmatpush1.bf16.xpose.msra.mxu0 0
    %170 = vmatprep.subr.bf16.mxu0 0
    %171 = vmatpush1.bf16.xpose.msra.mxu0 0
    %172 = vmatprep.subr.bf16.mxu0 0
    %173 = vmatpush1.bf16.xpose.msra.mxu0 0
    %174 = vmatprep.subr.bf16.mxu0 0
    %175 = vmatpush1.bf16.xpose.msra.mxu0 0
    %176 = vmatprep.subr.bf16.mxu0 0
    %177 = vmatpush1.bf16.xpose.msra.mxu0 0
    %178 = vmatprep.subr.bf16.mxu0 0
    %179 = vmatpush1.bf16.xpose.msra.mxu0 0
    %180 = vmatprep.subr.bf16.mxu0 0
    %181 = vmatpush1.bf16.xpose.msra.mxu0 0
    %182 = vmatprep.subr.bf16.mxu0 0
    %183 = vmatpush1.bf16.xpose.msra.mxu0 0
    %184 = vmatprep.subr.bf16.mxu0 0
    %185 = vmatpush1.bf16.xpose.msra.mxu0 0
    %186 = vmatprep.subr.bf16.mxu0 0
    %187 = vmatpush1.bf16.xpose.msra.mxu0 0
    %188 = vmatprep.mubr.bf16.mxu0 0
    %189 = vmatmul.mubr.bf16.gmra.mrb[0].mxu0 %v151
    %v190 = vpop.f32.mrb[0].mxu0
    %v191 = vadd.f32 %v65, %v190
    %v192 = vpop.f32.mrb[0].mxu0
    %v193 = vpop.f32.mrb[0].mxu0
    %v194 = vpop.f32.mrb[0].mxu0
    %195 = vdwg.mxu0
    %197 = vrot.lane.b32.xlu0 %v143, 96
    %v198 = vpop.permute.xlu0 %197
    %v200 = vsel %vm149, %v143, 0
    %v203 = vsel %vm149, %v198, 0
    %205 = vmatprep.subr.bf16.mxu0 0
    %206 = vmatpush1.bf16.xpose.msra.mxu0 %v203
    %207 = vmatprep.subr.bf16.mxu0 0
    %208 = vmatpush1.bf16.xpose.msra.mxu0 0
    %209 = vmatprep.subr.bf16.mxu0 0
    %210 = vmatpush1.bf16.xpose.msra.mxu0 0
    %211 = vmatprep.subr.bf16.mxu0 0
    %212 = vmatpush1.bf16.xpose.msra.mxu0 0
    %213 = vmatprep.subr.bf16.mxu0 0
    %214 = vmatpush1.bf16.xpose.msra.mxu0 0
    %215 = vmatprep.subr.bf16.mxu0 0
    %216 = vmatpush1.bf16.xpose.msra.mxu0 0
    %217 = vmatprep.subr.bf16.mxu0 0
    %218 = vmatpush1.bf16.xpose.msra.mxu0 0
    %219 = vmatprep.subr.bf16.mxu0 0
    %220 = vmatpush1.bf16.xpose.msra.mxu0 0
    %221 = vmatprep.subr.bf16.mxu0 0
    %222 = vmatpush1.bf16.xpose.msra.mxu0 0
    %223 = vmatprep.subr.bf16.mxu0 0
    %224 = vmatpush1.bf16.xpose.msra.mxu0 0
    %225 = vmatprep.subr.bf16.mxu0 0
    %226 = vmatpush1.bf16.xpose.msra.mxu0 0
    %227 = vmatprep.subr.bf16.mxu0 0
    %228 = vmatpush1.bf16.xpose.msra.mxu0 0
    %229 = vmatprep.subr.bf16.mxu0 0
    %230 = vmatpush1.bf16.xpose.msra.mxu0 0
    %231 = vmatprep.subr.bf16.mxu0 0
    %232 = vmatpush1.bf16.xpose.msra.mxu0 0
    %233 = vmatprep.subr.bf16.mxu0 0
    %234 = vmatpush1.bf16.xpose.msra.mxu0 0
    %235 = vmatprep.subr.bf16.mxu0 0
    %236 = vmatpush1.bf16.xpose.msra.mxu0 0
    %237 = vmatprep.mubr.bf16.mxu0 0
    %238 = vmatmul.mubr.bf16.gmra.mrb[0].mxu0 %v200
    %v239 = vpop.f32.mrb[0].mxu0
    %v240 = vadd.f32 %v65, %v239
    %v241 = vpop.f32.mrb[0].mxu0
    %v242 = vpop.f32.mrb[0].mxu0
    %v243 = vpop.f32.mrb[0].mxu0
    %244 = vdwg.mxu0
    %246 = vrot.lane.b32.xlu0 %v144, 96
    %v247 = vpop.permute.xlu0 %246
    %v249 = vsel %vm149, %v144, 0
    %v252 = vsel %vm149, %v247, 0
    %254 = vmatprep.subr.bf16.mxu0 0
    %255 = vmatpush1.bf16.xpose.msra.mxu0 %v252
    %256 = vmatprep.subr.bf16.mxu0 0
    %257 = vmatpush1.bf16.xpose.msra.mxu0 0
    %258 = vmatprep.subr.bf16.mxu0 0
    %259 = vmatpush1.bf16.xpose.msra.mxu0 0
    %260 = vmatprep.subr.bf16.mxu0 0
    %261 = vmatpush1.bf16.xpose.msra.mxu0 0
    %262 = vmatprep.subr.bf16.mxu0 0
    %263 = vmatpush1.bf16.xpose.msra.mxu0 0
    %264 = vmatprep.subr.bf16.mxu0 0
    %265 = vmatpush1.bf16.xpose.msra.mxu0 0
    %266 = vmatprep.subr.bf16.mxu0 0
    %267 = vmatpush1.bf16.xpose.msra.mxu0 0
    %268 = vmatprep.subr.bf16.mxu0 0
    %269 = vmatpush1.bf16.xpose.msra.mxu0 0
    %270 = vmatprep.subr.bf16.mxu0 0
    %271 = vmatpush1.bf16.xpose.msra.mxu0 0
    %272 = vmatprep.subr.bf16.mxu0 0
    %273 = vmatpush1.bf16.xpose.msra.mxu0 0
    %274 = vmatprep.subr.bf16.mxu0 0
    %275 = vmatpush1.bf16.xpose.msra.mxu0 0
    %276 = vmatprep.subr.bf16.mxu0 0
    %277 = vmatpush1.bf16.xpose.msra.mxu0 0
    %278 = vmatprep.subr.bf16.mxu0 0
    %279 = vmatpush1.bf16.xpose.msra.mxu0 0
    %280 = vmatprep.subr.bf16.mxu0 0
    %281 = vmatpush1.bf16.xpose.msra.mxu0 0
    %282 = vmatprep.subr.bf16.mxu0 0
    %283 = vmatpush1.bf16.xpose.msra.mxu0 0
    %284 = vmatprep.subr.bf16.mxu0 0
    %285 = vmatpush1.bf16.xpose.msra.mxu0 0
    %286 = vmatprep.mubr.bf16.mxu0 0
    %287 = vmatmul.mubr.bf16.gmra.mrb[0].mxu0 %v249
    %v288 = vpop.f32.mrb[0].mxu0
    %v289 = vadd.f32 %v65, %v288
    %v290 = vpop.f32.mrb[0].mxu0
    %v291 = vpop.f32.mrb[0].mxu0
    %v292 = vpop.f32.mrb[0].mxu0
    %293 = vdwg.mxu0
    %295 = vrot.lane.b32.xlu0 %v145, 96
    %v296 = vpop.permute.xlu0 %295
    %v298 = vsel %vm149, %v145, 0
    %v301 = vsel %vm149, %v296, 0
    %303 = vmatprep.subr.bf16.mxu0 0
    %304 = vmatpush1.bf16.xpose.msra.mxu0 %v301
    %305 = vmatprep.subr.bf16.mxu0 0
    %306 = vmatpush1.bf16.xpose.msra.mxu0 0
    %307 = vmatprep.subr.bf16.mxu0 0
    %308 = vmatpush1.bf16.xpose.msra.mxu0 0
    %309 = vmatprep.subr.bf16.mxu0 0
    %310 = vmatpush1.bf16.xpose.msra.mxu0 0
    %311 = vmatprep.subr.bf16.mxu0 0
    %312 = vmatpush1.bf16.xpose.msra.mxu0 0
    %313 = vmatprep.subr.bf16.mxu0 0
    %314 = vmatpush1.bf16.xpose.msra.mxu0 0
    %315 = vmatprep.subr.bf16.mxu0 0
    %316 = vmatpush1.bf16.xpose.msra.mxu0 0
    %317 = vmatprep.subr.bf16.mxu0 0
    %318 = vmatpush1.bf16.xpose.msra.mxu0 0
    %319 = vmatprep.subr.bf16.mxu0 0
    %320 = vmatpush1.bf16.xpose.msra.mxu0 0
    %321 = vmatprep.subr.bf16.mxu0 0
    %322 = vmatpush1.bf16.xpose.msra.mxu0 0
    %323 = vmatprep.subr.bf16.mxu0 0
    %324 = vmatpush1.bf16.xpose.msra.mxu0 0
    %325 = vmatprep.subr.bf16.mxu0 0
    %326 = vmatpush1.bf16.xpose.msra.mxu0 0
    %327 = vmatprep.subr.bf16.mxu0 0
    %328 = vmatpush1.bf16.xpose.msra.mxu0 0
    %329 = vmatprep.subr.bf16.mxu0 0
    %330 = vmatpush1.bf16.xpose.msra.mxu0 0
    %331 = vmatprep.subr.bf16.mxu0 0
    %332 = vmatpush1.bf16.xpose.msra.mxu0 0
    %333 = vmatprep.subr.bf16.mxu0 0
    %334 = vmatpush1.bf16.xpose.msra.mxu0 0
    %335 = vmatprep.mubr.bf16.mxu0 0
    %336 = vmatmul.mubr.bf16.gmra.mrb[0].mxu0 %v298
    %v337 = vpop.f32.mrb[0].mxu0
    %v338 = vadd.f32 %v65, %v337
    %v339 = vpop.f32.mrb[0].mxu0
    %v340 = vpop.f32.mrb[0].mxu0
    %v341 = vpop.f32.mrb[0].mxu0
    %342 = vdwg.mxu0
    %v343 = vsel %vm149, %v191, -inf
    %344 = vmax.xlane.f32.xlu0 %v343
    %v345 = vpop.xlane.xlu0 %344
    %v346 = vsel %vm149, %v240, -inf
    %347 = vmax.xlane.f32.xlu0 %v346
    %v348 = vpop.xlane.xlu0 %347
    %v349 = vsel %vm149, %v289, -inf
    %350 = vmax.xlane.f32.xlu0 %v349
    %v351 = vpop.xlane.xlu0 %350
    %v352 = vsel %vm149, %v338, -inf
    %353 = vmax.xlane.f32.xlu0 %v352
    %v354 = vpop.xlane.xlu0 %353
    %v355 = vsub.f32 %v191, %v345
    %v356 = vsub.f32 %v240, %v348
    %v357 = vsub.f32 %v289, %v351
    %v358 = vsub.f32 %v338, %v354
    %v359 = vmul.f32 %v355, 1.442695
    %v360 = vpow.pop %v359
    %v361 = vmul.f32 %v356, 1.442695
    %v362 = vpow.pop %v361
    %v363 = vmul.f32 %v357, 1.442695
    %v364 = vpow.pop %v363
    %v365 = vmul.f32 %v358, 1.442695
    %v366 = vpow.pop %v365
    %v367 = vsel %vm149, %v360, 0.0
    %368 = vadd.xlane.f32.xlu0 %v367
    %v369 = vpop.xlane.xlu0 %368
    %v370 = vsel %vm149, %v362, 0.0
    %371 = vadd.xlane.f32.xlu0 %v370
    %v372 = vpop.xlane.xlu0 %371
    %v373 = vsel %vm149, %v364, 0.0
    %374 = vadd.xlane.f32.xlu0 %v373
    %v375 = vpop.xlane.xlu0 %374
    %v376 = vsel %vm149, %v366, 0.0
    %377 = vadd.xlane.f32.xlu0 %v376
    %v378 = vpop.xlane.xlu0 %377
    %v379 = vrcp.pop %v369
    %v380 = vrcp.pop %v372
    %v381 = vrcp.pop %v375
    %v382 = vrcp.pop %v378
    %v383 = vmul.f32 %v360, %v379
    %v384 = vmul.f32 %v362, %v380
    %v385 = vmul.f32 %v364, %v381
    %v386 = vmul.f32 %v366, %v382
    %v387 = vpack.c.bf16 %v383, %v383
    %v388 = vpack.c.bf16 %v384, %v384
    %v389 = vpack.c.bf16 %v385, %v385
    %v390 = vpack.c.bf16 %v386, %v386
    %391 = vrot.lane.b32.xlu0 %v142, 64
    %v392 = vpop.permute.xlu0 %391
    %v394 = vsel %vm149, %v387, 0
    %vm396 = vcmask 1043456
    %v398 = vsel %vm396, %v392, 0
    %400 = vmatprep.subr.bf16.mxu0 0
    %401 = vmatpush1.bf16.msra.mxu0 %v398
    %402 = vmatprep.subr.bf16.mxu0 0
    %403 = vmatpush1.bf16.msra.mxu0 0
    %404 = vmatprep.subr.bf16.mxu0 0
    %405 = vmatpush1.bf16.msra.mxu0 0
    %406 = vmatprep.subr.bf16.mxu0 0
    %407 = vmatpush1.bf16.msra.mxu0 0
    %408 = vmatprep.subr.bf16.mxu0 0
    %409 = vmatpush1.bf16.msra.mxu0 0
    %410 = vmatprep.subr.bf16.mxu0 0
    %411 = vmatpush1.bf16.msra.mxu0 0
    %412 = vmatprep.subr.bf16.mxu0 0
    %413 = vmatpush1.bf16.msra.mxu0 0
    %414 = vmatprep.subr.bf16.mxu0 0
    %415 = vmatpush1.bf16.msra.mxu0 0
    %416 = vmatprep.subr.bf16.mxu0 0
    %417 = vmatpush1.bf16.msra.mxu0 0
    %418 = vmatprep.subr.bf16.mxu0 0
    %419 = vmatpush1.bf16.msra.mxu0 0
    %420 = vmatprep.subr.bf16.mxu0 0
    %421 = vmatpush1.bf16.msra.mxu0 0
    %422 = vmatprep.subr.bf16.mxu0 0
    %423 = vmatpush1.bf16.msra.mxu0 0
    %424 = vmatprep.subr.bf16.mxu0 0
    %425 = vmatpush1.bf16.msra.mxu0 0
    %426 = vmatprep.subr.bf16.mxu0 0
    %427 = vmatpush1.bf16.msra.mxu0 0
    %428 = vmatprep.subr.bf16.mxu0 0
    %429 = vmatpush1.bf16.msra.mxu0 0
    %430 = vmatprep.subr.bf16.mxu0 0
    %431 = vmatpush1.bf16.msra.mxu0 0
    %432 = vmatprep.mubr.bf16.mxu0 0
    %433 = vmatmul.mubr.bf16.gmra.mrb[0].mxu0 %v394
    %v434 = vpop.f32.mrb[0].mxu0
    %v435 = vadd.f32 0.0, %v434
    %v436 = vpop.f32.mrb[0].mxu0
    %v437 = vpop.f32.mrb[0].mxu0
    %v438 = vpop.f32.mrb[0].mxu0
    %439 = vdwg.mxu0
    %440 = vrot.lane.b32.xlu0 %v143, 64
    %v441 = vpop.permute.xlu0 %440
    %v443 = vsel %vm149, %v388, 0
    %v446 = vsel %vm396, %v441, 0
    %448 = vmatprep.subr.bf16.mxu0 0
    %449 = vmatpush1.bf16.msra.mxu0 %v446
    %450 = vmatprep.subr.bf16.mxu0 0
    %451 = vmatpush1.bf16.msra.mxu0 0
    %452 = vmatprep.subr.bf16.mxu0 0
    %453 = vmatpush1.bf16.msra.mxu0 0
    %454 = vmatprep.subr.bf16.mxu0 0
    %455 = vmatpush1.bf16.msra.mxu0 0
    %456 = vmatprep.subr.bf16.mxu0 0
    %457 = vmatpush1.bf16.msra.mxu0 0
    %458 = vmatprep.subr.bf16.mxu0 0
    %459 = vmatpush1.bf16.msra.mxu0 0
    %460 = vmatprep.subr.bf16.mxu0 0
    %461 = vmatpush1.bf16.msra.mxu0 0
    %462 = vmatprep.subr.bf16.mxu0 0
    %463 = vmatpush1.bf16.msra.mxu0 0
    %464 = vmatprep.subr.bf16.mxu0 0
    %465 = vmatpush1.bf16.msra.mxu0 0
    %466 = vmatprep.subr.bf16.mxu0 0
    %467 = vmatpush1.bf16.msra.mxu0 0
    %468 = vmatprep.subr.bf16.mxu0 0
    %469 = vmatpush1.bf16.msra.mxu0 0
    %470 = vmatprep.subr.bf16.mxu0 0
    %471 = vmatpush1.bf16.msra.mxu0 0
    %472 = vmatprep.subr.bf16.mxu0 0
    %473 = vmatpush1.bf16.msra.mxu0 0
    %474 = vmatprep.subr.bf16.mxu0 0
    %475 = vmatpush1.bf16.msra.mxu0 0
    %476 = vmatprep.subr.bf16.mxu0 0
    %477 = vmatpush1.bf16.msra.mxu0 0
    %478 = vmatprep.subr.bf16.mxu0 0
    %479 = vmatpush1.bf16.msra.mxu0 0
    %480 = vmatprep.mubr.bf16.mxu0 0
    %481 = vmatmul.mubr.bf16.gmra.mrb[0].mxu0 %v443
    %v482 = vpop.f32.mrb[0].mxu0
    %v483 = vadd.f32 0.0, %v482
    %v484 = vpop.f32.mrb[0].mxu0
    %v485 = vpop.f32.mrb[0].mxu0
    %v486 = vpop.f32.mrb[0].mxu0
    %487 = vdwg.mxu0
    %488 = vrot.lane.b32.xlu0 %v144, 64
    %v489 = vpop.permute.xlu0 %488
    %v491 = vsel %vm149, %v389, 0
    %v494 = vsel %vm396, %v489, 0
    %496 = vmatprep.subr.bf16.mxu0 0
    %497 = vmatpush1.bf16.msra.mxu0 %v494
    %498 = vmatprep.subr.bf16.mxu0 0
    %499 = vmatpush1.bf16.msra.mxu0 0
    %500 = vmatprep.subr.bf16.mxu0 0
    %501 = vmatpush1.bf16.msra.mxu0 0
    %502 = vmatprep.subr.bf16.mxu0 0
    %503 = vmatpush1.bf16.msra.mxu0 0
    %504 = vmatprep.subr.bf16.mxu0 0
    %505 = vmatpush1.bf16.msra.mxu0 0
    %506 = vmatprep.subr.bf16.mxu0 0
    %507 = vmatpush1.bf16.msra.mxu0 0
    %508 = vmatprep.subr.bf16.mxu0 0
    %509 = vmatpush1.bf16.msra.mxu0 0
    %510 = vmatprep.subr.bf16.mxu0 0
    %511 = vmatpush1.bf16.msra.mxu0 0
    %512 = vmatprep.subr.bf16.mxu0 0
    %513 = vmatpush1.bf16.msra.mxu0 0
    %514 = vmatprep.subr.bf16.mxu0 0
    %515 = vmatpush1.bf16.msra.mxu0 0
    %516 = vmatprep.subr.bf16.mxu0 0
    %517 = vmatpush1.bf16.msra.mxu0 0
    %518 = vmatprep.subr.bf16.mxu0 0
    %519 = vmatpush1.bf16.msra.mxu0 0
    %520 = vmatprep.subr.bf16.mxu0 0
    %521 = vmatpush1.bf16.msra.mxu0 0
    %522 = vmatprep.subr.bf16.mxu0 0
    %523 = vmatpush1.bf16.msra.mxu0 0
    %524 = vmatprep.subr.bf16.mxu0 0
    %525 = vmatpush1.bf16.msra.mxu0 0
    %526 = vmatprep.subr.bf16.mxu0 0
    %527 = vmatpush1.bf16.msra.mxu0 0
    %528 = vmatprep.mubr.bf16.mxu0 0
    %529 = vmatmul.mubr.bf16.gmra.mrb[0].mxu0 %v491
    %v530 = vpop.f32.mrb[0].mxu0
    %v531 = vadd.f32 0.0, %v530
    %v532 = vpop.f32.mrb[0].mxu0
    %v533 = vpop.f32.mrb[0].mxu0
    %v534 = vpop.f32.mrb[0].mxu0
    %535 = vdwg.mxu0
    %536 = vrot.lane.b32.xlu0 %v145, 64
    %v537 = vpop.permute.xlu0 %536
    %v539 = vsel %vm149, %v390, 0
    %v542 = vsel %vm396, %v537, 0
    %544 = vmatprep.subr.bf16.mxu0 0
    %545 = vmatpush1.bf16.msra.mxu0 %v542
    %546 = vmatprep.subr.bf16.mxu0 0
    %547 = vmatpush1.bf16.msra.mxu0 0
    %548 = vmatprep.subr.bf16.mxu0 0
    %549 = vmatpush1.bf16.msra.mxu0 0
    %550 = vmatprep.subr.bf16.mxu0 0
    %551 = vmatpush1.bf16.msra.mxu0 0
    %552 = vmatprep.subr.bf16.mxu0 0
    %553 = vmatpush1.bf16.msra.mxu0 0
    %554 = vmatprep.subr.bf16.mxu0 0
    %555 = vmatpush1.bf16.msra.mxu0 0
    %556 = vmatprep.subr.bf16.mxu0 0
    %557 = vmatpush1.bf16.msra.mxu0 0
    %558 = vmatprep.subr.bf16.mxu0 0
    %559 = vmatpush1.bf16.msra.mxu0 0
    %560 = vmatprep.subr.bf16.mxu0 0
    %561 = vmatpush1.bf16.msra.mxu0 0
    %562 = vmatprep.subr.bf16.mxu0 0
    %563 = vmatpush1.bf16.msra.mxu0 0
    %564 = vmatprep.subr.bf16.mxu0 0
    %565 = vmatpush1.bf16.msra.mxu0 0
    %566 = vmatprep.subr.bf16.mxu0 0
    %567 = vmatpush1.bf16.msra.mxu0 0
    %568 = vmatprep.subr.bf16.mxu0 0
    %569 = vmatpush1.bf16.msra.mxu0 0
    %570 = vmatprep.subr.bf16.mxu0 0
    %571 = vmatpush1.bf16.msra.mxu0 0
    %572 = vmatprep.subr.bf16.mxu0 0
    %573 = vmatpush1.bf16.msra.mxu0 0
    %574 = vmatprep.subr.bf16.mxu0 0
    %575 = vmatpush1.bf16.msra.mxu0 0
    %576 = vmatprep.mubr.bf16.mxu0 0
    %577 = vmatmul.mubr.bf16.gmra.mrb[0].mxu0 %v539
    %v578 = vpop.f32.mrb[0].mxu0
    %v579 = vadd.f32 0.0, %v578
    %v580 = vpop.f32.mrb[0].mxu0
    %v581 = vpop.f32.mrb[0].mxu0
    %v582 = vpop.f32.mrb[0].mxu0
    %583 = vdwg.mxu0
    %v584 = vpack.c.bf16 %v435, %v435
    %v585 = vpack.c.bf16 %v483, %v483
    %v586 = vpack.c.bf16 %v531, %v531
    %v587 = vpack.c.bf16 %v579, %v579
    %v589 = vsel %vm149, %v584, 0
    %v592 = vsel %vm396, %v70, 0
    %594 = vmatprep.subr.bf16.mxu0 0
    %595 = vmatpush1.bf16.msra.mxu0 %v592
    %596 = vmatprep.subr.bf16.mxu0 0
    %597 = vmatpush1.bf16.msra.mxu0 0
    %598 = vmatprep.subr.bf16.mxu0 0
    %599 = vmatpush1.bf16.msra.mxu0 0
    %600 = vmatprep.subr.bf16.mxu0 0
    %601 = vmatpush1.bf16.msra.mxu0 0
    %602 = vmatprep.subr.bf16.mxu0 0
    %603 = vmatpush1.bf16.msra.mxu0 0
    %604 = vmatprep.subr.bf16.mxu0 0
    %605 = vmatpush1.bf16.msra.mxu0 0
    %606 = vmatprep.subr.bf16.mxu0 0
    %607 = vmatpush1.bf16.msra.mxu0 0
    %608 = vmatprep.subr.bf16.mxu0 0
    %609 = vmatpush1.bf16.msra.mxu0 0
    %610 = vmatprep.subr.bf16.mxu0 0
    %611 = vmatpush1.bf16.msra.mxu0 0
    %612 = vmatprep.subr.bf16.mxu0 0
    %613 = vmatpush1.bf16.msra.mxu0 0
    %614 = vmatprep.subr.bf16.mxu0 0
    %615 = vmatpush1.bf16.msra.mxu0 0
    %616 = vmatprep.subr.bf16.mxu0 0
    %617 = vmatpush1.bf16.msra.mxu0 0
    %618 = vmatprep.subr.bf16.mxu0 0
    %619 = vmatpush1.bf16.msra.mxu0 0
    %620 = vmatprep.subr.bf16.mxu0 0
    %621 = vmatpush1.bf16.msra.mxu0 0
    %622 = vmatprep.subr.bf16.mxu0 0
    %623 = vmatpush1.bf16.msra.mxu0 0
    %624 = vmatprep.subr.bf16.mxu0 0
    %625 = vmatpush1.bf16.msra.mxu0 0
    %626 = vmatprep.mubr.bf16.mxu0 0
    %627 = vmatmul.mubr.bf16.gmra.mrb[0].mxu0 %v589
    %v628 = vpop.f32.mrb[0].mxu0
    %v629 = vadd.f32 0.0, %v628
    %v630 = vpop.f32.mrb[0].mxu0
    %v631 = vpop.f32.mrb[0].mxu0
    %v632 = vpop.f32.mrb[0].mxu0
    %633 = vdwg.mxu0
    %v635 = vsel %vm149, %v585, 0
    %v638 = vsel %vm396, %v71, 0
    %640 = vmatprep.subr.bf16.mxu0 0
    %641 = vmatpush1.bf16.msra.mxu0 %v638
    %642 = vmatprep.subr.bf16.mxu0 0
    %643 = vmatpush1.bf16.msra.mxu0 0
    %644 = vmatprep.subr.bf16.mxu0 0
    %645 = vmatpush1.bf16.msra.mxu0 0
    %646 = vmatprep.subr.bf16.mxu0 0
    %647 = vmatpush1.bf16.msra.mxu0 0
    %648 = vmatprep.subr.bf16.mxu0 0
    %649 = vmatpush1.bf16.msra.mxu0 0
    %650 = vmatprep.subr.bf16.mxu0 0
    %651 = vmatpush1.bf16.msra.mxu0 0
    %652 = vmatprep.subr.bf16.mxu0 0
    %653 = vmatpush1.bf16.msra.mxu0 0
    %654 = vmatprep.subr.bf16.mxu0 0
    %655 = vmatpush1.bf16.msra.mxu0 0
    %656 = vmatprep.subr.bf16.mxu0 0
    %657 = vmatpush1.bf16.msra.mxu0 0
    %658 = vmatprep.subr.bf16.mxu0 0
    %659 = vmatpush1.bf16.msra.mxu0 0
    %660 = vmatprep.subr.bf16.mxu0 0
    %661 = vmatpush1.bf16.msra.mxu0 0
    %662 = vmatprep.subr.bf16.mxu0 0
    %663 = vmatpush1.bf16.msra.mxu0 0
    %664 = vmatprep.subr.bf16.mxu0 0
    %665 = vmatpush1.bf16.msra.mxu0 0
    %666 = vmatprep.subr.bf16.mxu0 0
    %667 = vmatpush1.bf16.msra.mxu0 0
    %668 = vmatprep.subr.bf16.mxu0 0
    %669 = vmatpush1.bf16.msra.mxu0 0
    %670 = vmatprep.subr.bf16.mxu0 0
    %671 = vmatpush1.bf16.msra.mxu0 0
    %672 = vmatprep.mubr.bf16.mxu0 0
    %673 = vmatmul.mubr.bf16.gmra.mrb[0].mxu0 %v635
    %v674 = vpop.f32.mrb[0].mxu0
    %v675 = vadd.f32 0.0, %v674
    %v676 = vpop.f32.mrb[0].mxu0
    %v677 = vpop.f32.mrb[0].mxu0
    %v678 = vpop.f32.mrb[0].mxu0
    %679 = vdwg.mxu0
    %v681 = vsel %vm149, %v586, 0
    %v684 = vsel %vm396, %v72, 0
    %686 = vmatprep.subr.bf16.mxu0 0
    %687 = vmatpush1.bf16.msra.mxu0 %v684
    %688 = vmatprep.subr.bf16.mxu0 0
    %689 = vmatpush1.bf16.msra.mxu0 0
    %690 = vmatprep.subr.bf16.mxu0 0
    %691 = vmatpush1.bf16.msra.mxu0 0
    %692 = vmatprep.subr.bf16.mxu0 0
    %693 = vmatpush1.bf16.msra.mxu0 0
    %694 = vmatprep.subr.bf16.mxu0 0
    %695 = vmatpush1.bf16.msra.mxu0 0
    %696 = vmatprep.subr.bf16.mxu0 0
    %697 = vmatpush1.bf16.msra.mxu0 0
    %698 = vmatprep.subr.bf16.mxu0 0
    %699 = vmatpush1.bf16.msra.mxu0 0
    %700 = vmatprep.subr.bf16.mxu0 0
    %701 = vmatpush1.bf16.msra.mxu0 0
    %702 = vmatprep.subr.bf16.mxu0 0
    %703 = vmatpush1.bf16.msra.mxu0 0
    %704 = vmatprep.subr.bf16.mxu0 0
    %705 = vmatpush1.bf16.msra.mxu0 0
    %706 = vmatprep.subr.bf16.mxu0 0
    %707 = vmatpush1.bf16.msra.mxu0 0
    %708 = vmatprep.subr.bf16.mxu0 0
    %709 = vmatpush1.bf16.msra.mxu0 0
    %710 = vmatprep.subr.bf16.mxu0 0
    %711 = vmatpush1.bf16.msra.mxu0 0
    %712 = vmatprep.subr.bf16.mxu0 0
    %713 = vmatpush1.bf16.msra.mxu0 0
    %714 = vmatprep.subr.bf16.mxu0 0
    %715 = vmatpush1.bf16.msra.mxu0 0
    %716 = vmatprep.subr.bf16.mxu0 0
    %717 = vmatpush1.bf16.msra.mxu0 0
    %718 = vmatprep.mubr.bf16.mxu0 0
    %719 = vmatmul.mubr.bf16.gmra.mrb[0].mxu0 %v681
    %v720 = vpop.f32.mrb[0].mxu0
    %v721 = vadd.f32 0.0, %v720
    %v722 = vpop.f32.mrb[0].mxu0
    %v723 = vpop.f32.mrb[0].mxu0
    %v724 = vpop.f32.mrb[0].mxu0
    %725 = vdwg.mxu0
    %v727 = vsel %vm149, %v587, 0
    %v730 = vsel %vm396, %v73, 0
    %732 = vmatprep.subr.bf16.mxu0 0
    %733 = vmatpush1.bf16.msra.mxu0 %v730
    %734 = vmatprep.subr.bf16.mxu0 0
    %735 = vmatpush1.bf16.msra.mxu0 0
    %736 = vmatprep.subr.bf16.mxu0 0
    %737 = vmatpush1.bf16.msra.mxu0 0
    %738 = vmatprep.subr.bf16.mxu0 0
    %739 = vmatpush1.bf16.msra.mxu0 0
    %740 = vmatprep.subr.bf16.mxu0 0
    %741 = vmatpush1.bf16.msra.mxu0 0
    %742 = vmatprep.subr.bf16.mxu0 0
    %743 = vmatpush1.bf16.msra.mxu0 0
    %744 = vmatprep.subr.bf16.mxu0 0
    %745 = vmatpush1.bf16.msra.mxu0 0
    %746 = vmatprep.subr.bf16.mxu0 0
    %747 = vmatpush1.bf16.msra.mxu0 0
    %748 = vmatprep.subr.bf16.mxu0 0
    %749 = vmatpush1.bf16.msra.mxu0 0
    %750 = vmatprep.subr.bf16.mxu0 0
    %751 = vmatpush1.bf16.msra.mxu0 0
    %752 = vmatprep.subr.bf16.mxu0 0
    %753 = vmatpush1.bf16.msra.mxu0 0
    %754 = vmatprep.subr.bf16.mxu0 0
    %755 = vmatpush1.bf16.msra.mxu0 0
    %756 = vmatprep.subr.bf16.mxu0 0
    %757 = vmatpush1.bf16.msra.mxu0 0
    %758 = vmatprep.subr.bf16.mxu0 0
    %759 = vmatpush1.bf16.msra.mxu0 0
    %760 = vmatprep.subr.bf16.mxu0 0
    %761 = vmatpush1.bf16.msra.mxu0 0
    %762 = vmatprep.subr.bf16.mxu0 0
    %763 = vmatpush1.bf16.msra.mxu0 0
    %764 = vmatprep.mubr.bf16.mxu0 0
    %765 = vmatmul.mubr.bf16.gmra.mrb[0].mxu0 %v727
    %v766 = vpop.f32.mrb[0].mxu0
    %v767 = vadd.f32 0.0, %v766
    %v768 = vpop.f32.mrb[0].mxu0
    %v769 = vpop.f32.mrb[0].mxu0
    %v770 = vpop.f32.mrb[0].mxu0
    %771 = vdwg.mxu0
    %v772 = vadd.f32 %v629, 0.0
    %v773 = vadd.f32 %v772, %v675
    %v774 = vadd.f32 %v773, %v721
    %v775 = vadd.f32 %v774, %v767
    %v777 = vlaneseq
    %v778 = vshrl.u32 %v777, 7
    %v779 = vsub.s32 0, %v778
    %v780 = vrot.slane %v74, %v779
    %v782 = vadd.f32 %v775, %v780
    %783 = vst.msk [vmem:[#allocation8] sm:$0xff] %vm88, %v782
    %s784 = scalar_lea.vmem [#allocation2], 4
    %v785 = vld [vmem:[%s784] sm:$0xf]
    %v787 = vsel %vm88, %v785, 0
    %789 = vmatprep.subr.bf16.mxu0 0
    %790 = vmatpush1.bf16.msra.mxu0 %v84
    %791 = vmatprep.subr.bf16.mxu0 0
    %792 = vmatpush1.bf16.msra.mxu0 %v85
    %793 = vmatprep.subr.bf16.mxu0 0
    %794 = vmatpush1.bf16.msra.mxu0 0
    %795 = vmatprep.subr.bf16.mxu0 0
    %796 = vmatpush1.bf16.msra.mxu0 0
    %797 = vmatprep.subr.bf16.mxu0 0
    %798 = vmatpush1.bf16.msra.mxu0 0
    %799 = vmatprep.subr.bf16.mxu0 0
    %800 = vmatpush1.bf16.msra.mxu0 0
    %801 = vmatprep.subr.bf16.mxu0 0
    %802 = vmatpush1.bf16.msra.mxu0 0
    %803 = vmatprep.subr.bf16.mxu0 0
    %804 = vmatpush1.bf16.msra.mxu0 0
    %805 = vmatprep.subr.bf16.mxu0 0
    %806 = vmatpush1.bf16.msra.mxu0 0
    %807 = vmatprep.subr.bf16.mxu0 0
    %808 = vmatpush1.bf16.msra.mxu0 0
    %809 = vmatprep.subr.bf16.mxu0 0
    %810 = vmatpush1.bf16.msra.mxu0 0
    %811 = vmatprep.subr.bf16.mxu0 0
    %812 = vmatpush1.bf16.msra.mxu0 0
    %813 = vmatprep.subr.bf16.mxu0 0
    %814 = vmatpush1.bf16.msra.mxu0 0
    %815 = vmatprep.subr.bf16.mxu0 0
    %816 = vmatpush1.bf16.msra.mxu0 0
    %817 = vmatprep.subr.bf16.mxu0 0
    %818 = vmatpush1.bf16.msra.mxu0 0
    %819 = vmatprep.subr.bf16.mxu0 0
    %820 = vmatpush1.bf16.msra.mxu0 0
    %821 = vmatprep.mubr.bf16.mxu0 0
    %822 = vmatmul.mubr.bf16.gmra.mrb[0].mxu0 %v787
    %v823 = vpop.f32.mrb[0].mxu0
    %v824 = vadd.f32 0.0, %v823
    %v825 = vpop.f32.mrb[0].mxu0
    %v826 = vpop.f32.mrb[0].mxu0
    %v827 = vpop.f32.mrb[0].mxu0
    %828 = vdwg.mxu0
    %830 = vrot.lane.b32.xlu0 %v824, 120
    %v831 = vpop.permute.xlu0 %830
    %833 = vrot.lane.b32.xlu0 %v824, 112
    %v834 = vpop.permute.xlu0 %833
    %836 = vrot.lane.b32.xlu0 %v824, 104
    %v837 = vpop.permute.xlu0 %836
    %v839 = vpack.c.bf16 %v824, %v824
    %v840 = vpack.c.bf16 %v831, %v831
    %v841 = vpack.c.bf16 %v834, %v834
    %v842 = vpack.c.bf16 %v837, %v837
    %844 = vrot.lane.b32.xlu0 %v839, 96
    %v845 = vpop.permute.xlu0 %844
    %v847 = vsel %vm149, %v839, 0
    %v850 = vsel %vm149, %v845, 0
    %852 = vmatprep.subr.bf16.mxu0 0
    %853 = vmatpush1.bf16.xpose.msra.mxu0 %v850
    %854 = vmatprep.subr.bf16.mxu0 0
    %855 = vmatpush1.bf16.xpose.msra.mxu0 0
    %856 = vmatprep.subr.bf16.mxu0 0
    %857 = vmatpush1.bf16.xpose.msra.mxu0 0
    %858 = vmatprep.subr.bf16.mxu0 0
    %859 = vmatpush1.bf16.xpose.msra.mxu0 0
    %860 = vmatprep.subr.bf16.mxu0 0
    %861 = vmatpush1.bf16.xpose.msra.mxu0 0
    %862 = vmatprep.subr.bf16.mxu0 0
    %863 = vmatpush1.bf16.xpose.msra.mxu0 0
    %864 = vmatprep.subr.bf16.mxu0 0
    %865 = vmatpush1.bf16.xpose.msra.mxu0 0
    %866 = vmatprep.subr.bf16.mxu0 0
    %867 = vmatpush1.bf16.xpose.msra.mxu0 0
    %868 = vmatprep.subr.bf16.mxu0 0
    %869 = vmatpush1.bf16.xpose.msra.mxu0 0
    %870 = vmatprep.subr.bf16.mxu0 0
    %871 = vmatpush1.bf16.xpose.msra.mxu0 0
    %872 = vmatprep.subr.bf16.mxu0 0
    %873 = vmatpush1.bf16.xpose.msra.mxu0 0
    %874 = vmatprep.subr.bf16.mxu0 0
    %875 = vmatpush1.bf16.xpose.msra.mxu0 0
    %876 = vmatprep.subr.bf16.mxu0 0
    %877 = vmatpush1.bf16.xpose.msra.mxu0 0
    %878 = vmatprep.subr.bf16.mxu0 0
    %879 = vmatpush1.bf16.xpose.msra.mxu0 0
    %880 = vmatprep.subr.bf16.mxu0 0
    %881 = vmatpush1.bf16.xpose.msra.mxu0 0
    %882 = vmatprep.subr.bf16.mxu0 0
    %883 = vmatpush1.bf16.xpose.msra.mxu0 0
    %884 = vmatprep.mubr.bf16.mxu0 0
    %885 = vmatmul.mubr.bf16.gmra.mrb[0].mxu0 %v847
    %v886 = vpop.f32.mrb[0].mxu0
    %v887 = vadd.f32 %v65, %v886
    %v888 = vpop.f32.mrb[0].mxu0
    %v889 = vpop.f32.mrb[0].mxu0
    %v890 = vpop.f32.mrb[0].mxu0
    %891 = vdwg.mxu0
    %893 = vrot.lane.b32.xlu0 %v840, 96
    %v894 = vpop.permute.xlu0 %893
    %v896 = vsel %vm149, %v840, 0
    %v899 = vsel %vm149, %v894, 0
    %901 = vmatprep.subr.bf16.mxu0 0
    %902 = vmatpush1.bf16.xpose.msra.mxu0 %v899
    %903 = vmatprep.subr.bf16.mxu0 0
    %904 = vmatpush1.bf16.xpose.msra.mxu0 0
    %905 = vmatprep.subr.bf16.mxu0 0
    %906 = vmatpush1.bf16.xpose.msra.mxu0 0
    %907 = vmatprep.subr.bf16.mxu0 0
    %908 = vmatpush1.bf16.xpose.msra.mxu0 0
    %909 = vmatprep.subr.bf16.mxu0 0
    %910 = vmatpush1.bf16.xpose.msra.mxu0 0
    %911 = vmatprep.subr.bf16.mxu0 0
    %912 = vmatpush1.bf16.xpose.msra.mxu0 0
    %913 = vmatprep.subr.bf16.mxu0 0
    %914 = vmatpush1.bf16.xpose.msra.mxu0 0
    %915 = vmatprep.subr.bf16.mxu0 0
    %916 = vmatpush1.bf16.xpose.msra.mxu0 0
    %917 = vmatprep.subr.bf16.mxu0 0
    %918 = vmatpush1.bf16.xpose.msra.mxu0 0
    %919 = vmatprep.subr.bf16.mxu0 0
    %920 = vmatpush1.bf16.xpose.msra.mxu0 0
    %921 = vmatprep.subr.bf16.mxu0 0
    %922 = vmatpush1.bf16.xpose.msra.mxu0 0
    %923 = vmatprep.subr.bf16.mxu0 0
    %924 = vmatpush1.bf16.xpose.msra.mxu0 0
    %925 = vmatprep.subr.bf16.mxu0 0
    %926 = vmatpush1.bf16.xpose.msra.mxu0 0
    %927 = vmatprep.subr.bf16.mxu0 0
    %928 = vmatpush1.bf16.xpose.msra.mxu0 0
    %929 = vmatprep.subr.bf16.mxu0 0
    %930 = vmatpush1.bf16.xpose.msra.mxu0 0
    %931 = vmatprep.subr.bf16.mxu0 0
    %932 = vmatpush1.bf16.xpose.msra.mxu0 0
    %933 = vmatprep.mubr.bf16.mxu0 0
    %934 = vmatmul.mubr.bf16.gmra.mrb[0].mxu0 %v896
    %v935 = vpop.f32.mrb[0].mxu0
    %v936 = vadd.f32 %v65, %v935
    %v937 = vpop.f32.mrb[0].mxu0
    %v938 = vpop.f32.mrb[0].mxu0
    %v939 = vpop.f32.mrb[0].mxu0
    %940 = vdwg.mxu0
    %942 = vrot.lane.b32.xlu0 %v841, 96
    %v943 = vpop.permute.xlu0 %942
    %v945 = vsel %vm149, %v841, 0
    %v948 = vsel %vm149, %v943, 0
    %950 = vmatprep.subr.bf16.mxu0 0
    %951 = vmatpush1.bf16.xpose.msra.mxu0 %v948
    %952 = vmatprep.subr.bf16.mxu0 0
    %953 = vmatpush1.bf16.xpose.msra.mxu0 0
    %954 = vmatprep.subr.bf16.mxu0 0
    %955 = vmatpush1.bf16.xpose.msra.mxu0 0
    %956 = vmatprep.subr.bf16.mxu0 0
    %957 = vmatpush1.bf16.xpose.msra.mxu0 0
    %958 = vmatprep.subr.bf16.mxu0 0
    %959 = vmatpush1.bf16.xpose.msra.mxu0 0
    %960 = vmatprep.subr.bf16.mxu0 0
    %961 = vmatpush1.bf16.xpose.msra.mxu0 0
    %962 = vmatprep.subr.bf16.mxu0 0
    %963 = vmatpush1.bf16.xpose.msra.mxu0 0
    %964 = vmatprep.subr.bf16.mxu0 0
    %965 = vmatpush1.bf16.xpose.msra.mxu0 0
    %966 = vmatprep.subr.bf16.mxu0 0
    %967 = vmatpush1.bf16.xpose.msra.mxu0 0
    %968 = vmatprep.subr.bf16.mxu0 0
    %969 = vmatpush1.bf16.xpose.msra.mxu0 0
    %970 = vmatprep.subr.bf16.mxu0 0
    %971 = vmatpush1.bf16.xpose.msra.mxu0 0
    %972 = vmatprep.subr.bf16.mxu0 0
    %973 = vmatpush1.bf16.xpose.msra.mxu0 0
    %974 = vmatprep.subr.bf16.mxu0 0
    %975 = vmatpush1.bf16.xpose.msra.mxu0 0
    %976 = vmatprep.subr.bf16.mxu0 0
    %977 = vmatpush1.bf16.xpose.msra.mxu0 0
    %978 = vmatprep.subr.bf16.mxu0 0
    %979 = vmatpush1.bf16.xpose.msra.mxu0 0
    %980 = vmatprep.subr.bf16.mxu0 0
    %981 = vmatpush1.bf16.xpose.msra.mxu0 0
    %982 = vmatprep.mubr.bf16.mxu0 0
    %983 = vmatmul.mubr.bf16.gmra.mrb[0].mxu0 %v945
    %v984 = vpop.f32.mrb[0].mxu0
    %v985 = vadd.f32 %v65, %v984
    %v986 = vpop.f32.mrb[0].mxu0
    %v987 = vpop.f32.mrb[0].mxu0
    %v988 = vpop.f32.mrb[0].mxu0
    %989 = vdwg.mxu0
    %991 = vrot.lane.b32.xlu0 %v842, 96
    %v992 = vpop.permute.xlu0 %991
    %v994 = vsel %vm149, %v842, 0
    %v997 = vsel %vm149, %v992, 0
    %999 = vmatprep.subr.bf16.mxu0 0
    %1000 = vmatpush1.bf16.xpose.msra.mxu0 %v997
    %1001 = vmatprep.subr.bf16.mxu0 0
    %1002 = vmatpush1.bf16.xpose.msra.mxu0 0
    %1003 = vmatprep.subr.bf16.mxu0 0
    %1004 = vmatpush1.bf16.xpose.msra.mxu0 0
    %1005 = vmatprep.subr.bf16.mxu0 0
    %1006 = vmatpush1.bf16.xpose.msra.mxu0 0
    %1007 = vmatprep.subr.bf16.mxu0 0
    %1008 = vmatpush1.bf16.xpose.msra.mxu0 0
    %1009 = vmatprep.subr.bf16.mxu0 0
    %1010 = vmatpush1.bf16.xpose.msra.mxu0 0
    %1011 = vmatprep.subr.bf16.mxu0 0
    %1012 = vmatpush1.bf16.xpose.msra.mxu0 0
    %1013 = vmatprep.subr.bf16.mxu0 0
    %1014 = vmatpush1.bf16.xpose.msra.mxu0 0
    %1015 = vmatprep.subr.bf16.mxu0 0
    %1016 = vmatpush1.bf16.xpose.msra.mxu0 0
    %1017 = vmatprep.subr.bf16.mxu0 0
    %1018 = vmatpush1.bf16.xpose.msra.mxu0 0
    %1019 = vmatprep.subr.bf16.mxu0 0
    %1020 = vmatpush1.bf16.xpose.msra.mxu0 0
    %1021 = vmatprep.subr.bf16.mxu0 0
    %1022 = vmatpush1.bf16.xpose.msra.mxu0 0
    %1023 = vmatprep.subr.bf16.mxu0 0
    %1024 = vmatpush1.bf16.xpose.msra.mxu0 0
    %1025 = vmatprep.subr.bf16.mxu0 0
    %1026 = vmatpush1.bf16.xpose.msra.mxu0 0
    %1027 = vmatprep.subr.bf16.mxu0 0
    %1028 = vmatpush1.bf16.xpose.msra.mxu0 0
    %1029 = vmatprep.subr.bf16.mxu0 0
    %1030 = vmatpush1.bf16.xpose.msra.mxu0 0
    %1031 = vmatprep.mubr.bf16.mxu0 0
    %1032 = vmatmul.mubr.bf16.gmra.mrb[0].mxu0 %v994
    %v1033 = vpop.f32.mrb[0].mxu0
    %v1034 = vadd.f32 %v65, %v1033
    %v1035 = vpop.f32.mrb[0].mxu0
    %v1036 = vpop.f32.mrb[0].mxu0
    %v1037 = vpop.f32.mrb[0].mxu0
    %1038 = vdwg.mxu0
    %v1039 = vsel %vm149, %v887, -inf
    %1040 = vmax.xlane.f32.xlu0 %v1039
    %v1041 = vpop.xlane.xlu0 %1040
    %v1042 = vsel %vm149, %v936, -inf
    %1043 = vmax.xlane.f32.xlu0 %v1042
    %v1044 = vpop.xlane.xlu0 %1043
    %v1045 = vsel %vm149, %v985, -inf
    %1046 = vmax.xlane.f32.xlu0 %v1045
    %v1047 = vpop.xlane.xlu0 %1046
    %v1048 = vsel %vm149, %v1034, -inf
    %1049 = vmax.xlane.f32.xlu0 %v1048
    %v1050 = vpop.xlane.xlu0 %1049
    %v1051 = vsub.f32 %v887, %v1041
    %v1052 = vsub.f32 %v936, %v1044
    %v1053 = vsub.f32 %v985, %v1047
    %v1054 = vsub.f32 %v1034, %v1050
    %v1055 = vmul.f32 %v1051, 1.442695
    %v1056 = vpow.pop %v1055
    %v1057 = vmul.f32 %v1052, 1.442695
    %v1058 = vpow.pop %v1057
    %v1059 = vmul.f32 %v1053, 1.442695
    %v1060 = vpow.pop %v1059
    %v1061 = vmul.f32 %v1054, 1.442695
    %v1062 = vpow.pop %v1061
    %v1063 = vsel %vm149, %v1056, 0.0
    %1064 = vadd.xlane.f32.xlu0 %v1063
    %v1065 = vpop.xlane.xlu0 %1064
    %v1066 = vsel %vm149, %v1058, 0.0
    %1067 = vadd.xlane.f32.xlu0 %v1066
    %v1068 = vpop.xlane.xlu0 %1067
    %v1069 = vsel %vm149, %v1060, 0.0
    %1070 = vadd.xlane.f32.xlu0 %v1069
    %v1071 = vpop.xlane.xlu0 %1070
    %v1072 = vsel %vm149, %v1062, 0.0
    %1073 = vadd.xlane.f32.xlu0 %v1072
    %v1074 = vpop.xlane.xlu0 %1073
    %v1075 = vrcp.pop %v1065
    %v1076 = vrcp.pop %v1068
    %v1077 = vrcp.pop %v1071
    %v1078 = vrcp.pop %v1074
    %v1079 = vmul.f32 %v1056, %v1075
    %v1080 = vmul.f32 %v1058, %v1076
    %v1081 = vmul.f32 %v1060, %v1077
    %v1082 = vmul.f32 %v1062, %v1078
    %v1083 = vpack.c.bf16 %v1079, %v1079
    %v1084 = vpack.c.bf16 %v1080, %v1080
    %v1085 = vpack.c.bf16 %v1081, %v1081
    %v1086 = vpack.c.bf16 %v1082, %v1082
    %1087 = vrot.lane.b32.xlu0 %v839, 64
    %v1088 = vpop.permute.xlu0 %1087
    %v1090 = vsel %vm149, %v1083, 0
    %v1093 = vsel %vm396, %v1088, 0
    %1095 = vmatprep.subr.bf16.mxu0 0
    %1096 = vmatpush1.bf16.msra.mxu0 %v1093
    %1097 = vmatprep.subr.bf16.mxu0 0
    %1098 = vmatpush1.bf16.msra.mxu0 0
    %1099 = vmatprep.subr.bf16.mxu0 0
    %1100 = vmatpush1.bf16.msra.mxu0 0
    %1101 = vmatprep.subr.bf16.mxu0 0
    %1102 = vmatpush1.bf16.msra.mxu0 0
    %1103 = vmatprep.subr.bf16.mxu0 0
    %1104 = vmatpush1.bf16.msra.mxu0 0
    %1105 = vmatprep.subr.bf16.mxu0 0
    %1106 = vmatpush1.bf16.msra.mxu0 0
    %1107 = vmatprep.subr.bf16.mxu0 0
    %1108 = vmatpush1.bf16.msra.mxu0 0
    %1109 = vmatprep.subr.bf16.mxu0 0
    %1110 = vmatpush1.bf16.msra.mxu0 0
    %1111 = vmatprep.subr.bf16.mxu0 0
    %1112 = vmatpush1.bf16.msra.mxu0 0
    %1113 = vmatprep.subr.bf16.mxu0 0
    %1114 = vmatpush1.bf16.msra.mxu0 0
    %1115 = vmatprep.subr.bf16.mxu0 0
    %1116 = vmatpush1.bf16.msra.mxu0 0
    %1117 = vmatprep.subr.bf16.mxu0 0
    %1118 = vmatpush1.bf16.msra.mxu0 0
    %1119 = vmatprep.subr.bf16.mxu0 0
    %1120 = vmatpush1.bf16.msra.mxu0 0
    %1121 = vmatprep.subr.bf16.mxu0 0
    %1122 = vmatpush1.bf16.msra.mxu0 0
    %1123 = vmatprep.subr.bf16.mxu0 0
    %1124 = vmatpush1.bf16.msra.mxu0 0
    %1125 = vmatprep.subr.bf16.mxu0 0
    %1126 = vmatpush1.bf16.msra.mxu0 0
    %1127 = vmatprep.mubr.bf16.mxu0 0
    %1128 = vmatmul.mubr.bf16.gmra.mrb[0].mxu0 %v1090
    %v1129 = vpop.f32.mrb[0].mxu0
    %v1130 = vadd.f32 0.0, %v1129
    %v1131 = vpop.f32.mrb[0].mxu0
    %v1132 = vpop.f32.mrb[0].mxu0
    %v1133 = vpop.f32.mrb[0].mxu0
    %1134 = vdwg.mxu0
    %1135 = vrot.lane.b32.xlu0 %v840, 64
    %v1136 = vpop.permute.xlu0 %1135
    %v1138 = vsel %vm149, %v1084, 0
    %v1141 = vsel %vm396, %v1136, 0
    %1143 = vmatprep.subr.bf16.mxu0 0
    %1144 = vmatpush1.bf16.msra.mxu0 %v1141
    %1145 = vmatprep.subr.bf16.mxu0 0
    %1146 = vmatpush1.bf16.msra.mxu0 0
    %1147 = vmatprep.subr.bf16.mxu0 0
    %1148 = vmatpush1.bf16.msra.mxu0 0
    %1149 = vmatprep.subr.bf16.mxu0 0
    %1150 = vmatpush1.bf16.msra.mxu0 0
    %1151 = vmatprep.subr.bf16.mxu0 0
    %1152 = vmatpush1.bf16.msra.mxu0 0
    %1153 = vmatprep.subr.bf16.mxu0 0
    %1154 = vmatpush1.bf16.msra.mxu0 0
    %1155 = vmatprep.subr.bf16.mxu0 0
    %1156 = vmatpush1.bf16.msra.mxu0 0
    %1157 = vmatprep.subr.bf16.mxu0 0
    %1158 = vmatpush1.bf16.msra.mxu0 0
    %1159 = vmatprep.subr.bf16.mxu0 0
    %1160 = vmatpush1.bf16.msra.mxu0 0
    %1161 = vmatprep.subr.bf16.mxu0 0
    %1162 = vmatpush1.bf16.msra.mxu0 0
    %1163 = vmatprep.subr.bf16.mxu0 0
    %1164 = vmatpush1.bf16.msra.mxu0 0
    %1165 = vmatprep.subr.bf16.mxu0 0
    %1166 = vmatpush1.bf16.msra.mxu0 0
    %1167 = vmatprep.subr.bf16.mxu0 0
    %1168 = vmatpush1.bf16.msra.mxu0 0
    %1169 = vmatprep.subr.bf16.mxu0 0
    %1170 = vmatpush1.bf16.msra.mxu0 0
    %1171 = vmatprep.subr.bf16.mxu0 0
    %1172 = vmatpush1.bf16.msra.mxu0 0
    %1173 = vmatprep.subr.bf16.mxu0 0
    %1174 = vmatpush1.bf16.msra.mxu0 0
    %1175 = vmatprep.mubr.bf16.mxu0 0
    %1176 = vmatmul.mubr.bf16.gmra.mrb[0].mxu0 %v1138
    %v1177 = vpop.f32.mrb[0].mxu0
    %v1178 = vadd.f32 0.0, %v1177
    %v1179 = vpop.f32.mrb[0].mxu0
    %v1180 = vpop.f32.mrb[0].mxu0
    %v1181 = vpop.f32.mrb[0].mxu0
    %1182 = vdwg.mxu0
    %1183 = vrot.lane.b32.xlu0 %v841, 64
    %v1184 = vpop.permute.xlu0 %1183
    %v1186 = vsel %vm149, %v1085, 0
    %v1189 = vsel %vm396, %v1184, 0
    %1191 = vmatprep.subr.bf16.mxu0 0
    %1192 = vmatpush1.bf16.msra.mxu0 %v1189
    %1193 = vmatprep.subr.bf16.mxu0 0
    %1194 = vmatpush1.bf16.msra.mxu0 0
    %1195 = vmatprep.subr.bf16.mxu0 0
    %1196 = vmatpush1.bf16.msra.mxu0 0
    %1197 = vmatprep.subr.bf16.mxu0 0
    %1198 = vmatpush1.bf16.msra.mxu0 0
    %1199 = vmatprep.subr.bf16.mxu0 0
    %1200 = vmatpush1.bf16.msra.mxu0 0
    %1201 = vmatprep.subr.bf16.mxu0 0
    %1202 = vmatpush1.bf16.msra.mxu0 0
    %1203 = vmatprep.subr.bf16.mxu0 0
    %1204 = vmatpush1.bf16.msra.mxu0 0
    %1205 = vmatprep.subr.bf16.mxu0 0
    %1206 = vmatpush1.bf16.msra.mxu0 0
    %1207 = vmatprep.subr.bf16.mxu0 0
    %1208 = vmatpush1.bf16.msra.mxu0 0
    %1209 = vmatprep.subr.bf16.mxu0 0
    %1210 = vmatpush1.bf16.msra.mxu0 0
    %1211 = vmatprep.subr.bf16.mxu0 0
    %1212 = vmatpush1.bf16.msra.mxu0 0
    %1213 = vmatprep.subr.bf16.mxu0 0
    %1214 = vmatpush1.bf16.msra.mxu0 0
    %1215 = vmatprep.subr.bf16.mxu0 0
    %1216 = vmatpush1.bf16.msra.mxu0 0
    %1217 = vmatprep.subr.bf16.mxu0 0
    %1218 = vmatpush1.bf16.msra.mxu0 0
    %1219 = vmatprep.subr.bf16.mxu0 0
    %1220 = vmatpush1.bf16.msra.mxu0 0
    %1221 = vmatprep.subr.bf16.mxu0 0
    %1222 = vmatpush1.bf16.msra.mxu0 0
    %1223 = vmatprep.mubr.bf16.mxu0 0
    %1224 = vmatmul.mubr.bf16.gmra.mrb[0].mxu0 %v1186
    %v1225 = vpop.f32.mrb[0].mxu0
    %v1226 = vadd.f32 0.0, %v1225
    %v1227 = vpop.f32.mrb[0].mxu0
    %v1228 = vpop.f32.mrb[0].mxu0
    %v1229 = vpop.f32.mrb[0].mxu0
    %1230 = vdwg.mxu0
    %1231 = vrot.lane.b32.xlu0 %v842, 64
    %v1232 = vpop.permute.xlu0 %1231
    %v1234 = vsel %vm149, %v1086, 0
    %v1237 = vsel %vm396, %v1232, 0
    %1239 = vmatprep.subr.bf16.mxu0 0
    %1240 = vmatpush1.bf16.msra.mxu0 %v1237
    %1241 = vmatprep.subr.bf16.mxu0 0
    %1242 = vmatpush1.bf16.msra.mxu0 0
    %1243 = vmatprep.subr.bf16.mxu0 0
    %1244 = vmatpush1.bf16.msra.mxu0 0
    %1245 = vmatprep.subr.bf16.mxu0 0
    %1246 = vmatpush1.bf16.msra.mxu0 0
    %1247 = vmatprep.subr.bf16.mxu0 0
    %1248 = vmatpush1.bf16.msra.mxu0 0
    %1249 = vmatprep.subr.bf16.mxu0 0
    %1250 = vmatpush1.bf16.msra.mxu0 0
    %1251 = vmatprep.subr.bf16.mxu0 0
    %1252 = vmatpush1.bf16.msra.mxu0 0
    %1253 = vmatprep.subr.bf16.mxu0 0
    %1254 = vmatpush1.bf16.msra.mxu0 0
    %1255 = vmatprep.subr.bf16.mxu0 0
    %1256 = vmatpush1.bf16.msra.mxu0 0
    %1257 = vmatprep.subr.bf16.mxu0 0
    %1258 = vmatpush1.bf16.msra.mxu0 0
    %1259 = vmatprep.subr.bf16.mxu0 0
    %1260 = vmatpush1.bf16.msra.mxu0 0
    %1261 = vmatprep.subr.bf16.mxu0 0
    %1262 = vmatpush1.bf16.msra.mxu0 0
    %1263 = vmatprep.subr.bf16.mxu0 0
    %1264 = vmatpush1.bf16.msra.mxu0 0
    %1265 = vmatprep.subr.bf16.mxu0 0
    %1266 = vmatpush1.bf16.msra.mxu0 0
    %1267 = vmatprep.subr.bf16.mxu0 0
    %1268 = vmatpush1.bf16.msra.mxu0 0
    %1269 = vmatprep.subr.bf16.mxu0 0
    %1270 = vmatpush1.bf16.msra.mxu0 0
    %1271 = vmatprep.mubr.bf16.mxu0 0
    %1272 = vmatmul.mubr.bf16.gmra.mrb[0].mxu0 %v1234
    %v1273 = vpop.f32.mrb[0].mxu0
    %v1274 = vadd.f32 0.0, %v1273
    %v1275 = vpop.f32.mrb[0].mxu0
    %v1276 = vpop.f32.mrb[0].mxu0
    %v1277 = vpop.f32.mrb[0].mxu0
    %1278 = vdwg.mxu0
    %v1279 = vpack.c.bf16 %v1130, %v1130
    %v1280 = vpack.c.bf16 %v1178, %v1178
    %v1281 = vpack.c.bf16 %v1226, %v1226
    %v1282 = vpack.c.bf16 %v1274, %v1274
    %v1284 = vsel %vm149, %v1279, 0
    %1286 = vmatprep.subr.bf16.mxu0 0
    %1287 = vmatpush1.bf16.msra.mxu0 %v592
    %1288 = vmatprep.subr.bf16.mxu0 0
    %1289 = vmatpush1.bf16.msra.mxu0 0
    %1290 = vmatprep.subr.bf16.mxu0 0
    %1291 = vmatpush1.bf16.msra.mxu0 0
    %1292 = vmatprep.subr.bf16.mxu0 0
    %1293 = vmatpush1.bf16.msra.mxu0 0
    %1294 = vmatprep.subr.bf16.mxu0 0
    %1295 = vmatpush1.bf16.msra.mxu0 0
    %1296 = vmatprep.subr.bf16.mxu0 0
    %1297 = vmatpush1.bf16.msra.mxu0 0
    %1298 = vmatprep.subr.bf16.mxu0 0
    %1299 = vmatpush1.bf16.msra.mxu0 0
    %1300 = vmatprep.subr.bf16.mxu0 0
    %1301 = vmatpush1.bf16.msra.mxu0 0
    %1302 = vmatprep.subr.bf16.mxu0 0
    %1303 = vmatpush1.bf16.msra.mxu0 0
    %1304 = vmatprep.subr.bf16.mxu0 0
    %1305 = vmatpush1.bf16.msra.mxu0 0
    %1306 = vmatprep.subr.bf16.mxu0 0
    %1307 = vmatpush1.bf16.msra.mxu0 0
    %1308 = vmatprep.subr.bf16.mxu0 0
    %1309 = vmatpush1.bf16.msra.mxu0 0
    %1310 = vmatprep.subr.bf16.mxu0 0
    %1311 = vmatpush1.bf16.msra.mxu0 0
    %1312 = vmatprep.subr.bf16.mxu0 0
    %1313 = vmatpush1.bf16.msra.mxu0 0
    %1314 = vmatprep.subr.bf16.mxu0 0
    %1315 = vmatpush1.bf16.msra.mxu0 0
    %1316 = vmatprep.subr.bf16.mxu0 0
    %1317 = vmatpush1.bf16.msra.mxu0 0
    %1318 = vmatprep.mubr.bf16.mxu0 0
    %1319 = vmatmul.mubr.bf16.gmra.mrb[0].mxu0 %v1284
    %v1320 = vpop.f32.mrb[0].mxu0
    %v1321 = vadd.f32 0.0, %v1320
    %v1322 = vpop.f32.mrb[0].mxu0
    %v1323 = vpop.f32.mrb[0].mxu0
    %v1324 = vpop.f32.mrb[0].mxu0
    %1325 = vdwg.mxu0
    %v1327 = vsel %vm149, %v1280, 0
    %1329 = vmatprep.subr.bf16.mxu0 0
    %1330 = vmatpush1.bf16.msra.mxu0 %v638
    %1331 = vmatprep.subr.bf16.mxu0 0
    %1332 = vmatpush1.bf16.msra.mxu0 0
    %1333 = vmatprep.subr.bf16.mxu0 0
    %1334 = vmatpush1.bf16.msra.mxu0 0
    %1335 = vmatprep.subr.bf16.mxu0 0
    %1336 = vmatpush1.bf16.msra.mxu0 0
    %1337 = vmatprep.subr.bf16.mxu0 0
    %1338 = vmatpush1.bf16.msra.mxu0 0
    %1339 = vmatprep.subr.bf16.mxu0 0
    %1340 = vmatpush1.bf16.msra.mxu0 0
    %1341 = vmatprep.subr.bf16.mxu0 0
    %1342 = vmatpush1.bf16.msra.mxu0 0
    %1343 = vmatprep.subr.bf16.mxu0 0
    %1344 = vmatpush1.bf16.msra.mxu0 0
    %1345 = vmatprep.subr.bf16.mxu0 0
    %1346 = vmatpush1.bf16.msra.mxu0 0
    %1347 = vmatprep.subr.bf16.mxu0 0
    %1348 = vmatpush1.bf16.msra.mxu0 0
    %1349 = vmatprep.subr.bf16.mxu0 0
    %1350 = vmatpush1.bf16.msra.mxu0 0
    %1351 = vmatprep.subr.bf16.mxu0 0
    %1352 = vmatpush1.bf16.msra.mxu0 0
    %1353 = vmatprep.subr.bf16.mxu0 0
    %1354 = vmatpush1.bf16.msra.mxu0 0
    %1355 = vmatprep.subr.bf16.mxu0 0
    %1356 = vmatpush1.bf16.msra.mxu0 0
    %1357 = vmatprep.subr.bf16.mxu0 0
    %1358 = vmatpush1.bf16.msra.mxu0 0
    %1359 = vmatprep.subr.bf16.mxu0 0
    %1360 = vmatpush1.bf16.msra.mxu0 0
    %1361 = vmatprep.mubr.bf16.mxu0 0
    %1362 = vmatmul.mubr.bf16.gmra.mrb[0].mxu0 %v1327
    %v1363 = vpop.f32.mrb[0].mxu0
    %v1364 = vadd.f32 0.0, %v1363
    %v1365 = vpop.f32.mrb[0].mxu0
    %v1366 = vpop.f32.mrb[0].mxu0
    %v1367 = vpop.f32.mrb[0].mxu0
    %1368 = vdwg.mxu0
    %v1370 = vsel %vm149, %v1281, 0
    %1372 = vmatprep.subr.bf16.mxu0 0
    %1373 = vmatpush1.bf16.msra.mxu0 %v684
    %1374 = vmatprep.subr.bf16.mxu0 0
    %1375 = vmatpush1.bf16.msra.mxu0 0
    %1376 = vmatprep.subr.bf16.mxu0 0
    %1377 = vmatpush1.bf16.msra.mxu0 0
    %1378 = vmatprep.subr.bf16.mxu0 0
    %1379 = vmatpush1.bf16.msra.mxu0 0
    %1380 = vmatprep.subr.bf16.mxu0 0
    %1381 = vmatpush1.bf16.msra.mxu0 0
    %1382 = vmatprep.subr.bf16.mxu0 0
    %1383 = vmatpush1.bf16.msra.mxu0 0
    %1384 = vmatprep.subr.bf16.mxu0 0
    %1385 = vmatpush1.bf16.msra.mxu0 0
    %1386 = vmatprep.subr.bf16.mxu0 0
    %1387 = vmatpush1.bf16.msra.mxu0 0
    %1388 = vmatprep.subr.bf16.mxu0 0
    %1389 = vmatpush1.bf16.msra.mxu0 0
    %1390 = vmatprep.subr.bf16.mxu0 0
    %1391 = vmatpush1.bf16.msra.mxu0 0
    %1392 = vmatprep.subr.bf16.mxu0 0
    %1393 = vmatpush1.bf16.msra.mxu0 0
    %1394 = vmatprep.subr.bf16.mxu0 0
    %1395 = vmatpush1.bf16.msra.mxu0 0
    %1396 = vmatprep.subr.bf16.mxu0 0
    %1397 = vmatpush1.bf16.msra.mxu0 0
    %1398 = vmatprep.subr.bf16.mxu0 0
    %1399 = vmatpush1.bf16.msra.mxu0 0
    %1400 = vmatprep.subr.bf16.mxu0 0
    %1401 = vmatpush1.bf16.msra.mxu0 0
    %1402 = vmatprep.subr.bf16.mxu0 0
    %1403 = vmatpush1.bf16.msra.mxu0 0
    %1404 = vmatprep.mubr.bf16.mxu0 0
    %1405 = vmatmul.mubr.bf16.gmra.mrb[0].mxu0 %v1370
    %v1406 = vpop.f32.mrb[0].mxu0
    %v1407 = vadd.f32 0.0, %v1406
    %v1408 = vpop.f32.mrb[0].mxu0
    %v1409 = vpop.f32.mrb[0].mxu0
    %v1410 = vpop.f32.mrb[0].mxu0
    %1411 = vdwg.mxu0
    %v1413 = vsel %vm149, %v1282, 0
    %1415 = vmatprep.subr.bf16.mxu0 0
    %1416 = vmatpush1.bf16.msra.mxu0 %v730
    %1417 = vmatprep.subr.bf16.mxu0 0
    %1418 = vmatpush1.bf16.msra.mxu0 0
    %1419 = vmatprep.subr.bf16.mxu0 0
    %1420 = vmatpush1.bf16.msra.mxu0 0
    %1421 = vmatprep.subr.bf16.mxu0 0
    %1422 = vmatpush1.bf16.msra.mxu0 0
    %1423 = vmatprep.subr.bf16.mxu0 0
    %1424 = vmatpush1.bf16.msra.mxu0 0
    %1425 = vmatprep.subr.bf16.mxu0 0
    %1426 = vmatpush1.bf16.msra.mxu0 0
    %1427 = vmatprep.subr.bf16.mxu0 0
    %1428 = vmatpush1.bf16.msra.mxu0 0
    %1429 = vmatprep.subr.bf16.mxu0 0
    %1430 = vmatpush1.bf16.msra.mxu0 0
    %1431 = vmatprep.subr.bf16.mxu0 0
    %1432 = vmatpush1.bf16.msra.mxu0 0
    %1433 = vmatprep.subr.bf16.mxu0 0
    %1434 = vmatpush1.bf16.msra.mxu0 0
    %1435 = vmatprep.subr.bf16.mxu0 0
    %1436 = vmatpush1.bf16.msra.mxu0 0
    %1437 = vmatprep.subr.bf16.mxu0 0
    %1438 = vmatpush1.bf16.msra.mxu0 0
    %1439 = vmatprep.subr.bf16.mxu0 0
    %1440 = vmatpush1.bf16.msra.mxu0 0
    %1441 = vmatprep.subr.bf16.mxu0 0
    %1442 = vmatpush1.bf16.msra.mxu0 0
    %1443 = vmatprep.subr.bf16.mxu0 0
    %1444 = vmatpush1.bf16.msra.mxu0 0
    %1445 = vmatprep.subr.bf16.mxu0 0
    %1446 = vmatpush1.bf16.msra.mxu0 0
    %1447 = vmatprep.mubr.bf16.mxu0 0
    %1448 = vmatmul.mubr.bf16.gmra.mrb[0].mxu0 %v1413
    %v1449 = vpop.f32.mrb[0].mxu0
    %v1450 = vadd.f32 0.0, %v1449
    %v1451 = vpop.f32.mrb[0].mxu0
    %v1452 = vpop.f32.mrb[0].mxu0
    %v1453 = vpop.f32.mrb[0].mxu0
    %1454 = vdwg.mxu0
    %v1455 = vadd.f32 %v1321, 0.0
    %v1456 = vadd.f32 %v1455, %v1364
    %v1457 = vadd.f32 %v1456, %v1407
    %v1458 = vadd.f32 %v1457, %v1450
    %v1459 = vadd.f32 %v1458, %v780
    %s1460 = scalar_lea.vmem [#allocation8], 8
    %1461 = vst.msk [vmem:[%s1460] sm:$0xff] %vm88, %v1459
    // Predicated region
    $region30: #{tpu_custom_call.1} parent=1 // pred_check
      _
    $region31: #{tpu_custom_call.1} parent=1 // pred_check_branch
      %1463 = sbr.rel (0) target = $region33
    $region32: #{tpu_custom_call.1} parent=1 // pred_region
      %s1465 = ssub.s32 256, 256
      %1466 = vsyncadd [#allocation4], %s1465
      %s1467 = sshll.u32 [#allocation8], 4
      %s1468 = int_to_ptr.vmem [resolvable:$true] %s1467
      %1473 = dma.vmem_to_hbm [thread:$0]  %s1468, 256, %s4, [#allocation4], 128, 128, 8
    $region33: #{tpu_custom_call.1} parent=1 // pred_fallthru
      _
    // Predicated region
    $region34: #{tpu_custom_call.1} parent=1 // pred_check
      _
    $region35: #{tpu_custom_call.1} parent=1 // pred_check_branch
      %1475 = sbr.rel (0) target = $region37
    $region36: #{tpu_custom_call.1} parent=1 // pred_region
      %1476 = dma.done [#allocation4], 256
    $region37: #{tpu_custom_call.1} parent=1 // pred_fallthru
      _
    %1477 = vsyncpa [#allocation3], 1
    %1478 = vsyncpa [#allocation6], 1
    %1479 = vsyncpa [#allocation4], 1

</llo_original>
